<compile_context>
chip_gen: v7x
topology: tpu7x:2x2x1
jax: 0.10.0
libtpu: 0.0.40
codegen_flags: <defaults>
</compile_context>

<pallas_src>
import functools

import jax
import jax.numpy as jnp
from jax.experimental import pallas as pl
from jax.experimental.pallas import tpu as pltpu

_LANE = 128
_SUBLANE = 8
_TB_MAX = 512        # ~512-row batch tiles: >=85% of HBM roofline vs ~30% at 128
_TB_MIN_SPLIT = 128  # don't split into tiles smaller than 128 rows


def _round_up(x, m):
    return (x + m - 1) // m * m


def _choose_batch_tiling(B):
    """Return (tile_rows, padded_batch). Batch padded only to a sublane
    multiple; >=2 grid steps for large B so both v7x TensorCores get work."""
    b8 = _round_up(B, _SUBLANE)
    if b8 < 2 * _TB_MIN_SPLIT:
        return b8, b8                               # single tile; too small to split
    n_tiles = max(2, pl.cdiv(b8, _TB_MAX))          # >=2 "parallel" steps (megacore)
    tb = _round_up(pl.cdiv(b8, n_tiles), _SUBLANE)
    return tb, tb * n_tiles


# ----------------------------------------------------------------------------
# Fused kernel: runs the whole autoencoder on one batch tile.
#   refs = (x_ref, w1, b1, ..., wL, bL, dec_ref, enc_ref)
# Each layer: y = bf16(h) @ bf16(W') + b'  (f32 accumulate, BN already folded),
# then ReLU (or a stable sigmoid on the last layer). The encoder output is
# written to enc_ref.
# ----------------------------------------------------------------------------
def _fused_autoencoder_kernel(*refs, n_enc, n_layers):
    x_ref = refs[0]
    wb = refs[1:1 + 2 * n_layers]
    dec_ref = refs[1 + 2 * n_layers]
    enc_ref = refs[2 + 2 * n_layers]

    h = x_ref[...]                                   # f32 activations
    for li in range(n_layers):                       # unrolled at trace time
        w = wb[2 * li][...]                          # bf16 weights, VMEM-resident
        b = wb[2 * li + 1][...]                      # f32 folded bias (1, dout_p)
        y = jnp.dot(h.astype(jnp.bfloat16), w,
                    preferred_element_type=jnp.float32) + b   # MXU + f32 epilogue
        if li == n_layers - 1:
            # numerically stable sigmoid; exp + approx reciprocal both hit the EUP
            e = jnp.exp(-jnp.abs(y))
            inv = pl.reciprocal(1.0 + e, approx=True)
            h = jnp.where(y >= 0.0, inv, e * inv)
            dec_ref[...] = h
        else:
            h = jnp.maximum(y, 0.0)                  # ReLU; Dropout = identity (eval)
            if li == n_enc - 1:
                enc_ref[...] = h


# ----------------------------------------------------------------------------
# Wrapper: params are already padded / bf16; only the input may need padding.
# ----------------------------------------------------------------------------
def autoencoder_forward(x, params):
    layers = params["layers"]
    n_enc = params["n_enc"]
    n_layers = len(layers)
    dims = params["dims"]

    B, d_in = x.shape
    assert d_in == dims[0], f"expected {dims[0]} input features, got {d_in}"
    d_enc, d_out = dims[3], dims[0]

    d_in_p = layers[0][0].shape[0]
    d_enc_p = layers[n_enc - 1][0].shape[1]
    d_out_p = layers[-1][0].shape[1]

    tb, b_pad = _choose_batch_tiling(B)

    # Pad the input only if needed (skip the extra HBM pass when aligned).
    if (b_pad, d_in_p) != (B, d_in):
        x_p = jnp.pad(x, ((0, b_pad - B), (0, d_in_p - d_in)))
    else:
        x_p = x

    # Advisory cost estimate so XLA schedules surrounding ops sensibly.
    flops = 2 * b_pad * sum(w.shape[0] * w.shape[1] for (w, _) in layers)
    bytes_accessed = (
        x_p.size * x_p.dtype.itemsize
        + b_pad * (d_out_p + d_enc_p) * 4
        + sum(w.size * w.dtype.itemsize + b.size * b.dtype.itemsize
              for (w, b) in layers))
    cost = pl.CostEstimate(flops=flops,
                           transcendentals=b_pad * d_out_p,
                           bytes_accessed=bytes_accessed)

    kernel = functools.partial(_fused_autoencoder_kernel,
                               n_enc=n_enc, n_layers=n_layers)
    out_shape = (jax.ShapeDtypeStruct((b_pad, d_out_p), jnp.float32),
                 jax.ShapeDtypeStruct((b_pad, d_enc_p), jnp.float32))
    flat_args = [x_p] + [a for lw in layers for a in lw]

    def _const_spec(shape, single_buffer):
        # Constant across the grid: index_map always (0, 0). Single-buffer it
        # when supported (halves resident weight/bias VMEM).
        if single_buffer:
            return pl.BlockSpec(shape, lambda i: (0, 0),
                                pipeline_mode=pl.Buffered(1))
        return pl.BlockSpec(shape, lambda i: (0, 0))

    def _run(single_buffer_weights):
        in_specs = [pl.BlockSpec((tb, d_in_p), lambda i: (i, 0))]
        for (w_p, b_p) in layers:
            din_p, dout_p = w_p.shape
            in_specs.append(_const_spec((din_p, dout_p), single_buffer_weights))
            in_specs.append(_const_spec((1, dout_p), single_buffer_weights))
        return pl.pallas_call(
            kernel,
            out_shape=out_shape,
            grid_spec=pl.GridSpec(
                grid=(b_pad // tb,),
                in_specs=in_specs,
                out_specs=(pl.BlockSpec((tb, d_out_p), lambda i: (i, 0)),
                           pl.BlockSpec((tb, d_enc_p), lambda i: (i, 0))),
            ),
            compiler_params=pltpu.CompilerParams(
                dimension_semantics=("parallel",)),
            cost_estimate=cost,
        )(*flat_args)

    try:
        dec_p, enc_p = _run(single_buffer_weights=True)
    except Exception:
        # Fallback if this JAX version rejects single-buffered blocks.
        dec_p, enc_p = _run(single_buffer_weights=False)

    decoded = dec_p if (b_pad, d_out_p) == (B, d_out) else dec_p[:B, :d_out]
    encoded = enc_p if (b_pad, d_enc_p) == (B, d_enc) else enc_p[:B, :d_enc]
    return decoded, encoded


# ----------------------------------------------------------------------------
# Parameter construction (mirrors nn.Linear / nn.BatchNorm1d default init).
# Linear ~ U(-1/sqrt(fan_in), 1/sqrt(fan_in)); BN gamma=1, beta=0,
# running_mean=0, running_var=1, eps=1e-5. Eval-mode BN is folded into (W, b).
# Padding to lane-dense shapes and the bf16 cast happen ONCE here, not per call.
# ----------------------------------------------------------------------------
def _make_linear(key, din, dout):
    kw, kb = jax.random.split(key)
    bound = 1.0 / jnp.sqrt(jnp.float32(din))
    w = jax.random.uniform(kw, (din, dout), jnp.float32, -bound, bound)
    b = jax.random.uniform(kb, (dout,), jnp.float32, -bound, bound)
    return w, b


def _fold_bn(w, b, dout, eps=1e-5):
    gamma = jnp.ones((dout,), jnp.float32)
    beta = jnp.zeros((dout,), jnp.float32)
    mean = jnp.zeros((dout,), jnp.float32)
    var = jnp.ones((dout,), jnp.float32)
    scale = gamma / jnp.sqrt(var + eps)
    shift = beta - mean * scale
    return w * scale[None, :], b * scale + shift


def build_autoencoder_params(key, dims):
    """Builds the fused-kernel params: pre-padded bf16 weights, f32 biases.
    Also keeps the raw f32 (unpadded) layers for a pure-JAX reference check."""
    keys = jax.random.split(key, 6)
    layer_dims = [(dims[0], dims[1]), (dims[1], dims[2]), (dims[2], dims[3]),
                  (dims[3], dims[2]), (dims[2], dims[1]), (dims[1], dims[0])]
    raw = []
    for i, (din, dout) in enumerate(layer_dims):
        w, b = _make_linear(keys[i], din, dout)
        if i != len(layer_dims) - 1:          # final Linear has no BatchNorm
            w, b = _fold_bn(w, b, dout)
        raw.append((w, b))

    padded = []
    for (w, b) in raw:
        din, dout = w.shape
        din_p, dout_p = _round_up(din, _LANE), _round_up(dout, _LANE)
        w_p = jnp.pad(w, ((0, din_p - din), (0, dout_p - dout))).astype(jnp.bfloat16)
        b_p = jnp.pad(b, (0, dout_p - dout)).reshape(1, dout_p).astype(jnp.float32)
        padded.append((w_p, b_p))

    return {"layers": padded, "n_enc": 3, "dims": tuple(dims), "raw_layers": raw}


# ----------------------------------------------------------------------------
# Pure-JAX f32 reference for a numerical sanity check.
# ----------------------------------------------------------------------------
def autoencoder_forward_ref(x, raw_layers, n_enc):
    h = x
    encoded = None
    for i, (w, b) in enumerate(raw_layers):
        y = h @ w + b
        if i == len(raw_layers) - 1:
            decoded = jax.nn.sigmoid(y)
        else:
            h = jnp.maximum(y, 0.0)
            if i == n_enc - 1:
                encoded = h
    return decoded, encoded


if __name__ == "__main__":
    dims = [64, 32, 16, 8]          # dims[0] = input features, dims[3] = bottleneck
    batch = 8

    key = jax.random.PRNGKey(0)
    k_params, k_x = jax.random.split(key)
    params = build_autoencoder_params(k_params, dims)

    # Input in [0, 1] (autoencoder with sigmoid reconstruction).
    x = jax.random.uniform(k_x, (batch, dims[0]), jnp.float32)

    decoded, encoded = autoencoder_forward(x, params)
    decoded = jax.block_until_ready(decoded)
    encoded = jax.block_until_ready(encoded)

    assert decoded.shape == (batch, dims[0])
    assert encoded.shape == (batch, dims[3])

    dec_ref, enc_ref = autoencoder_forward_ref(x, params["raw_layers"],
                                               params["n_enc"])
    # Tolerance relaxed vs an all-f32 kernel: bf16 MXU operands + approx
    # reciprocal in the sigmoid introduce ~1e-3-level deviations.
    assert jnp.allclose(decoded, dec_ref, atol=2e-2, rtol=2e-2)
    assert jnp.allclose(encoded, enc_ref, atol=2e-2, rtol=2e-2)

    print("KERNEL_OK")
</pallas_src>

<mosaic_0001>
module attributes {stable_mosaic.version = 11 : i64} {
  func.func @_fused_autoencoder_kernel(%arg0: i32, %arg1: memref<8x128xf32, #tpu.memory_space<vmem>>, %arg2: memref<128x128xbf16, #tpu.memory_space<vmem>>, %arg3: memref<1x128xf32, #tpu.memory_space<vmem>>, %arg4: memref<128x128xbf16, #tpu.memory_space<vmem>>, %arg5: memref<1x128xf32, #tpu.memory_space<vmem>>, %arg6: memref<128x128xbf16, #tpu.memory_space<vmem>>, %arg7: memref<1x128xf32, #tpu.memory_space<vmem>>, %arg8: memref<128x128xbf16, #tpu.memory_space<vmem>>, %arg9: memref<1x128xf32, #tpu.memory_space<vmem>>, %arg10: memref<128x128xbf16, #tpu.memory_space<vmem>>, %arg11: memref<1x128xf32, #tpu.memory_space<vmem>>, %arg12: memref<128x128xbf16, #tpu.memory_space<vmem>>, %arg13: memref<1x128xf32, #tpu.memory_space<vmem>>, %arg14: memref<8x128xf32, #tpu.memory_space<vmem>>, %arg15: memref<8x128xf32, #tpu.memory_space<vmem>>) attributes {dimension_semantics = [#tpu.dimension_semantics<parallel>], iteration_bounds = array<i64: 1>, scalar_prefetch = 0 : i64, scratch_operands = 0 : i64, tpu.core_type = #tpu.core_type<tc>, window_params = [{transform_indices = @transform_0, window_bounds = array<i64: 8, 128>}, {pipeline_mode = #tpu.pipeline_mode<synchronous>, transform_indices = @transform_1, window_bounds = array<i64: 128, 128>}, {pipeline_mode = #tpu.pipeline_mode<synchronous>, transform_indices = @transform_2, window_bounds = array<i64: 1, 128>}, {pipeline_mode = #tpu.pipeline_mode<synchronous>, transform_indices = @transform_3, window_bounds = array<i64: 128, 128>}, {pipeline_mode = #tpu.pipeline_mode<synchronous>, transform_indices = @transform_4, window_bounds = array<i64: 1, 128>}, {pipeline_mode = #tpu.pipeline_mode<synchronous>, transform_indices = @transform_5, window_bounds = array<i64: 128, 128>}, {pipeline_mode = #tpu.pipeline_mode<synchronous>, transform_indices = @transform_6, window_bounds = array<i64: 1, 128>}, {pipeline_mode = #tpu.pipeline_mode<synchronous>, transform_indices = @transform_7, window_bounds = array<i64: 128, 128>}, {pipeline_mode = #tpu.pipeline_mode<synchronous>, transform_indices = @transform_8, window_bounds = array<i64: 1, 128>}, {pipeline_mode = #tpu.pipeline_mode<synchronous>, transform_indices = @transform_9, window_bounds = array<i64: 128, 128>}, {pipeline_mode = #tpu.pipeline_mode<synchronous>, transform_indices = @transform_10, window_bounds = array<i64: 1, 128>}, {pipeline_mode = #tpu.pipeline_mode<synchronous>, transform_indices = @transform_11, window_bounds = array<i64: 128, 128>}, {pipeline_mode = #tpu.pipeline_mode<synchronous>, transform_indices = @transform_12, window_bounds = array<i64: 1, 128>}, {transform_indices = @transform_13, window_bounds = array<i64: 8, 128>}, {transform_indices = @transform_14, window_bounds = array<i64: 8, 128>}]} {
    %c0 = arith.constant 0 : index
    %c0_0 = arith.constant 0 : index
    %0 = vector.load %arg1[%c0, %c0_0] : memref<8x128xf32, #tpu.memory_space<vmem>>, vector<8x128xf32>
    %c0_1 = arith.constant 0 : index
    %c0_2 = arith.constant 0 : index
    %1 = vector.load %arg2[%c0_1, %c0_2] : memref<128x128xbf16, #tpu.memory_space<vmem>>, vector<128x128xbf16>
    %c0_3 = arith.constant 0 : index
    %c0_4 = arith.constant 0 : index
    %2 = vector.load %arg3[%c0_3, %c0_4] : memref<1x128xf32, #tpu.memory_space<vmem>>, vector<1x128xf32>
    %3 = arith.truncf %0 : vector<8x128xf32> to vector<8x128xbf16>
    %cst = arith.constant dense<0.000000e+00> : vector<8x128xf32>
    %4 = tpu.matmul %3, %1, %cst {dimension_numbers = #tpu.dot_dimension_numbers<[1], [0], [0], [1], [0, 0, 1, 1], [], []>} : vector<8x128xbf16>, vector<128x128xbf16>, vector<8x128xf32> -> vector<8x128xf32>
    %5 = vector.broadcast %2 : vector<1x128xf32> to vector<8x128xf32>
    %6 = arith.addf %4, %5 : vector<8x128xf32>
    %cst_5 = arith.constant 0.000000e+00 : f32
    %7 = vector.broadcast %cst_5 : f32 to vector<8x128xf32>
    %8 = arith.maximumf %6, %7 : vector<8x128xf32>
    %c0_6 = arith.constant 0 : index
    %c0_7 = arith.constant 0 : index
    %9 = vector.load %arg4[%c0_6, %c0_7] : memref<128x128xbf16, #tpu.memory_space<vmem>>, vector<128x128xbf16>
    %c0_8 = arith.constant 0 : index
    %c0_9 = arith.constant 0 : index
    %10 = vector.load %arg5[%c0_8, %c0_9] : memref<1x128xf32, #tpu.memory_space<vmem>>, vector<1x128xf32>
    %11 = arith.truncf %8 : vector<8x128xf32> to vector<8x128xbf16>
    %cst_10 = arith.constant dense<0.000000e+00> : vector<8x128xf32>
    %12 = tpu.matmul %11, %9, %cst_10 {dimension_numbers = #tpu.dot_dimension_numbers<[1], [0], [0], [1], [0, 0, 1, 1], [], []>} : vector<8x128xbf16>, vector<128x128xbf16>, vector<8x128xf32> -> vector<8x128xf32>
    %13 = vector.broadcast %10 : vector<1x128xf32> to vector<8x128xf32>
    %14 = arith.addf %12, %13 : vector<8x128xf32>
    %cst_11 = arith.constant 0.000000e+00 : f32
    %15 = vector.broadcast %cst_11 : f32 to vector<8x128xf32>
    %16 = arith.maximumf %14, %15 : vector<8x128xf32>
    %c0_12 = arith.constant 0 : index
    %c0_13 = arith.constant 0 : index
    %17 = vector.load %arg6[%c0_12, %c0_13] : memref<128x128xbf16, #tpu.memory_space<vmem>>, vector<128x128xbf16>
    %c0_14 = arith.constant 0 : index
    %c0_15 = arith.constant 0 : index
    %18 = vector.load %arg7[%c0_14, %c0_15] : memref<1x128xf32, #tpu.memory_space<vmem>>, vector<1x128xf32>
    %19 = arith.truncf %16 : vector<8x128xf32> to vector<8x128xbf16>
    %cst_16 = arith.constant dense<0.000000e+00> : vector<8x128xf32>
    %20 = tpu.matmul %19, %17, %cst_16 {dimension_numbers = #tpu.dot_dimension_numbers<[1], [0], [0], [1], [0, 0, 1, 1], [], []>} : vector<8x128xbf16>, vector<128x128xbf16>, vector<8x128xf32> -> vector<8x128xf32>
    %21 = vector.broadcast %18 : vector<1x128xf32> to vector<8x128xf32>
    %22 = arith.addf %20, %21 : vector<8x128xf32>
    %cst_17 = arith.constant 0.000000e+00 : f32
    %23 = vector.broadcast %cst_17 : f32 to vector<8x128xf32>
    %24 = arith.maximumf %22, %23 : vector<8x128xf32>
    %c0_18 = arith.constant 0 : index
    %c0_19 = arith.constant 0 : index
    %25 = vector.load %arg15[%c0_18, %c0_19] : memref<8x128xf32, #tpu.memory_space<vmem>>, vector<8x128xf32>
    tpu.vector_store %arg15[%c0_18, %c0_19], %24 {strides = array<i32>} : memref<8x128xf32, #tpu.memory_space<vmem>>, vector<8x128xf32>,
    %c0_20 = arith.constant 0 : index
    %c0_21 = arith.constant 0 : index
    %26 = vector.load %arg8[%c0_20, %c0_21] : memref<128x128xbf16, #tpu.memory_space<vmem>>, vector<128x128xbf16>
    %c0_22 = arith.constant 0 : index
    %c0_23 = arith.constant 0 : index
    %27 = vector.load %arg9[%c0_22, %c0_23] : memref<1x128xf32, #tpu.memory_space<vmem>>, vector<1x128xf32>
    %28 = arith.truncf %24 : vector<8x128xf32> to vector<8x128xbf16>
    %cst_24 = arith.constant dense<0.000000e+00> : vector<8x128xf32>
    %29 = tpu.matmul %28, %26, %cst_24 {dimension_numbers = #tpu.dot_dimension_numbers<[1], [0], [0], [1], [0, 0, 1, 1], [], []>} : vector<8x128xbf16>, vector<128x128xbf16>, vector<8x128xf32> -> vector<8x128xf32>
    %30 = vector.broadcast %27 : vector<1x128xf32> to vector<8x128xf32>
    %31 = arith.addf %29, %30 : vector<8x128xf32>
    %cst_25 = arith.constant 0.000000e+00 : f32
    %32 = vector.broadcast %cst_25 : f32 to vector<8x128xf32>
    %33 = arith.maximumf %31, %32 : vector<8x128xf32>
    %c0_26 = arith.constant 0 : index
    %c0_27 = arith.constant 0 : index
    %34 = vector.load %arg10[%c0_26, %c0_27] : memref<128x128xbf16, #tpu.memory_space<vmem>>, vector<128x128xbf16>
    %c0_28 = arith.constant 0 : index
    %c0_29 = arith.constant 0 : index
    %35 = vector.load %arg11[%c0_28, %c0_29] : memref<1x128xf32, #tpu.memory_space<vmem>>, vector<1x128xf32>
    %36 = arith.truncf %33 : vector<8x128xf32> to vector<8x128xbf16>
    %cst_30 = arith.constant dense<0.000000e+00> : vector<8x128xf32>
    %37 = tpu.matmul %36, %34, %cst_30 {dimension_numbers = #tpu.dot_dimension_numbers<[1], [0], [0], [1], [0, 0, 1, 1], [], []>} : vector<8x128xbf16>, vector<128x128xbf16>, vector<8x128xf32> -> vector<8x128xf32>
    %38 = vector.broadcast %35 : vector<1x128xf32> to vector<8x128xf32>
    %39 = arith.addf %37, %38 : vector<8x128xf32>
    %cst_31 = arith.constant 0.000000e+00 : f32
    %40 = vector.broadcast %cst_31 : f32 to vector<8x128xf32>
    %41 = arith.maximumf %39, %40 : vector<8x128xf32>
    %c0_32 = arith.constant 0 : index
    %c0_33 = arith.constant 0 : index
    %42 = vector.load %arg12[%c0_32, %c0_33] : memref<128x128xbf16, #tpu.memory_space<vmem>>, vector<128x128xbf16>
    %c0_34 = arith.constant 0 : index
    %c0_35 = arith.constant 0 : index
    %43 = vector.load %arg13[%c0_34, %c0_35] : memref<1x128xf32, #tpu.memory_space<vmem>>, vector<1x128xf32>
    %44 = arith.truncf %41 : vector<8x128xf32> to vector<8x128xbf16>
    %cst_36 = arith.constant dense<0.000000e+00> : vector<8x128xf32>
    %45 = tpu.matmul %44, %42, %cst_36 {dimension_numbers = #tpu.dot_dimension_numbers<[1], [0], [0], [1], [0, 0, 1, 1], [], []>} : vector<8x128xbf16>, vector<128x128xbf16>, vector<8x128xf32> -> vector<8x128xf32>
    %46 = vector.broadcast %43 : vector<1x128xf32> to vector<8x128xf32>
    %47 = arith.addf %45, %46 : vector<8x128xf32>
    %48 = math.absf %47 : vector<8x128xf32>
    %cst_37 = arith.constant 0.000000e+00 : f32
    %49 = vector.broadcast %cst_37 : f32 to vector<8x128xf32>
    %50 = arith.subf %49, %48 : vector<8x128xf32>
    %51 = math.exp %50 : vector<8x128xf32>
    %cst_38 = arith.constant 1.000000e+00 : f32
    %52 = vector.broadcast %cst_38 : f32 to vector<8x128xf32>
    %53 = arith.addf %52, %51 : vector<8x128xf32>
    %54 = tpu.reciprocal %53 {approx = true} : vector<8x128xf32> -> vector<8x128xf32>
    %cst_39 = arith.constant 0.000000e+00 : f32
    %55 = vector.broadcast %cst_39 : f32 to vector<8x128xf32>
    %56 = arith.cmpf oge, %47, %55 : vector<8x128xf32>
    %57 = arith.mulf %51, %54 : vector<8x128xf32>
    %58 = arith.select %56, %54, %57 : vector<8x128xi1>, vector<8x128xf32>
    %c0_40 = arith.constant 0 : index
    %c0_41 = arith.constant 0 : index
    %59 = vector.load %arg14[%c0_40, %c0_41] : memref<8x128xf32, #tpu.memory_space<vmem>>, vector<8x128xf32>
    tpu.vector_store %arg14[%c0_40, %c0_41], %58 {strides = array<i32>} : memref<8x128xf32, #tpu.memory_space<vmem>>, vector<8x128xf32>,
    return
  }
  func.func @transform_0(%arg0: i32) -> (i32, i32) {
    %c0_i32 = arith.constant 0 : i32
    %c0_i32_0 = arith.constant 0 : i32
    return %arg0, %c0_i32 : i32, i32
  }
  func.func @transform_1(%arg0: i32) -> (i32, i32) {
    %c0_i32 = arith.constant 0 : i32
    %c0_i32_0 = arith.constant 0 : i32
    %c0_i32_1 = arith.constant 0 : i32
    return %c0_i32, %c0_i32_0 : i32, i32
  }
  func.func @transform_2(%arg0: i32) -> (i32, i32) {
    %c0_i32 = arith.constant 0 : i32
    %c0_i32_0 = arith.constant 0 : i32
    %c0_i32_1 = arith.constant 0 : i32
    return %c0_i32, %c0_i32_0 : i32, i32
  }
  func.func @transform_3(%arg0: i32) -> (i32, i32) {
    %c0_i32 = arith.constant 0 : i32
    %c0_i32_0 = arith.constant 0 : i32
    %c0_i32_1 = arith.constant 0 : i32
    return %c0_i32, %c0_i32_0 : i32, i32
  }
  func.func @transform_4(%arg0: i32) -> (i32, i32) {
    %c0_i32 = arith.constant 0 : i32
    %c0_i32_0 = arith.constant 0 : i32
    %c0_i32_1 = arith.constant 0 : i32
    return %c0_i32, %c0_i32_0 : i32, i32
  }
  func.func @transform_5(%arg0: i32) -> (i32, i32) {
    %c0_i32 = arith.constant 0 : i32
    %c0_i32_0 = arith.constant 0 : i32
    %c0_i32_1 = arith.constant 0 : i32
    return %c0_i32, %c0_i32_0 : i32, i32
  }
  func.func @transform_6(%arg0: i32) -> (i32, i32) {
    %c0_i32 = arith.constant 0 : i32
    %c0_i32_0 = arith.constant 0 : i32
    %c0_i32_1 = arith.constant 0 : i32
    return %c0_i32, %c0_i32_0 : i32, i32
  }
  func.func @transform_7(%arg0: i32) -> (i32, i32) {
    %c0_i32 = arith.constant 0 : i32
    %c0_i32_0 = arith.constant 0 : i32
    %c0_i32_1 = arith.constant 0 : i32
    return %c0_i32, %c0_i32_0 : i32, i32
  }
  func.func @transform_8(%arg0: i32) -> (i32, i32) {
    %c0_i32 = arith.constant 0 : i32
    %c0_i32_0 = arith.constant 0 : i32
    %c0_i32_1 = arith.constant 0 : i32
    return %c0_i32, %c0_i32_0 : i32, i32
  }
  func.func @transform_9(%arg0: i32) -> (i32, i32) {
    %c0_i32 = arith.constant 0 : i32
    %c0_i32_0 = arith.constant 0 : i32
    %c0_i32_1 = arith.constant 0 : i32
    return %c0_i32, %c0_i32_0 : i32, i32
  }
  func.func @transform_10(%arg0: i32) -> (i32, i32) {
    %c0_i32 = arith.constant 0 : i32
    %c0_i32_0 = arith.constant 0 : i32
    %c0_i32_1 = arith.constant 0 : i32
    return %c0_i32, %c0_i32_0 : i32, i32
  }
  func.func @transform_11(%arg0: i32) -> (i32, i32) {
    %c0_i32 = arith.constant 0 : i32
    %c0_i32_0 = arith.constant 0 : i32
    %c0_i32_1 = arith.constant 0 : i32
    return %c0_i32, %c0_i32_0 : i32, i32
  }
  func.func @transform_12(%arg0: i32) -> (i32, i32) {
    %c0_i32 = arith.constant 0 : i32
    %c0_i32_0 = arith.constant 0 : i32
    %c0_i32_1 = arith.constant 0 : i32
    return %c0_i32, %c0_i32_0 : i32, i32
  }
  func.func @transform_13(%arg0: i32) -> (i32, i32) {
    %c0_i32 = arith.constant 0 : i32
    %c0_i32_0 = arith.constant 0 : i32
    return %arg0, %c0_i32 : i32, i32
  }
  func.func @transform_14(%arg0: i32) -> (i32, i32) {
    %c0_i32 = arith.constant 0 : i32
    %c0_i32_0 = arith.constant 0 : i32
    return %arg0, %c0_i32 : i32, i32
  }
}

module attributes {stable_mosaic.version = 11 : i64} {
  func.func @_fused_autoencoder_kernel(%arg0: i32, %arg1: memref<8x128xf32, #tpu.memory_space<vmem>>, %arg2: memref<128x128xbf16, #tpu.memory_space<vmem>>, %arg3: memref<1x128xf32, #tpu.memory_space<vmem>>, %arg4: memref<128x128xbf16, #tpu.memory_space<vmem>>, %arg5: memref<1x128xf32, #tpu.memory_space<vmem>>, %arg6: memref<128x128xbf16, #tpu.memory_space<vmem>>, %arg7: memref<1x128xf32, #tpu.memory_space<vmem>>, %arg8: memref<128x128xbf16, #tpu.memory_space<vmem>>, %arg9: memref<1x128xf32, #tpu.memory_space<vmem>>, %arg10: memref<128x128xbf16, #tpu.memory_space<vmem>>, %arg11: memref<1x128xf32, #tpu.memory_space<vmem>>, %arg12: memref<128x128xbf16, #tpu.memory_space<vmem>>, %arg13: memref<1x128xf32, #tpu.memory_space<vmem>>, %arg14: memref<8x128xf32, #tpu.memory_space<vmem>>, %arg15: memref<8x128xf32, #tpu.memory_space<vmem>>) attributes {dimension_semantics = [#tpu.dimension_semantics<parallel>], iteration_bounds = array<i64: 1>, scalar_prefetch = 0 : i64, scratch_operands = 0 : i64, tpu.core_type = #tpu.core_type<tc>, window_params = [{transform_indices = @transform_0, window_bounds = array<i64: 8, 128>}, {pipeline_mode = #tpu.pipeline_mode<synchronous>, transform_indices = @transform_1, window_bounds = array<i64: 128, 128>}, {pipeline_mode = #tpu.pipeline_mode<synchronous>, transform_indices = @transform_2, window_bounds = array<i64: 1, 128>}, {pipeline_mode = #tpu.pipeline_mode<synchronous>, transform_indices = @transform_3, window_bounds = array<i64: 128, 128>}, {pipeline_mode = #tpu.pipeline_mode<synchronous>, transform_indices = @transform_4, window_bounds = array<i64: 1, 128>}, {pipeline_mode = #tpu.pipeline_mode<synchronous>, transform_indices = @transform_5, window_bounds = array<i64: 128, 128>}, {pipeline_mode = #tpu.pipeline_mode<synchronous>, transform_indices = @transform_6, window_bounds = array<i64: 1, 128>}, {pipeline_mode = #tpu.pipeline_mode<synchronous>, transform_indices = @transform_7, window_bounds = array<i64: 128, 128>}, {pipeline_mode = #tpu.pipeline_mode<synchronous>, transform_indices = @transform_8, window_bounds = array<i64: 1, 128>}, {pipeline_mode = #tpu.pipeline_mode<synchronous>, transform_indices = @transform_9, window_bounds = array<i64: 128, 128>}, {pipeline_mode = #tpu.pipeline_mode<synchronous>, transform_indices = @transform_10, window_bounds = array<i64: 1, 128>}, {pipeline_mode = #tpu.pipeline_mode<synchronous>, transform_indices = @transform_11, window_bounds = array<i64: 128, 128>}, {pipeline_mode = #tpu.pipeline_mode<synchronous>, transform_indices = @transform_12, window_bounds = array<i64: 1, 128>}, {transform_indices = @transform_13, window_bounds = array<i64: 8, 128>}, {transform_indices = @transform_14, window_bounds = array<i64: 8, 128>}]} {
    %c0 = arith.constant 0 : index
    %c0_0 = arith.constant 0 : index
    %0 = vector.load %arg1[%c0, %c0_0] : memref<8x128xf32, #tpu.memory_space<vmem>>, vector<8x128xf32>
    %c0_1 = arith.constant 0 : index
    %c0_2 = arith.constant 0 : index
    %1 = vector.load %arg2[%c0_1, %c0_2] : memref<128x128xbf16, #tpu.memory_space<vmem>>, vector<128x128xbf16>
    %c0_3 = arith.constant 0 : index
    %c0_4 = arith.constant 0 : index
    %2 = vector.load %arg3[%c0_3, %c0_4] : memref<1x128xf32, #tpu.memory_space<vmem>>, vector<1x128xf32>
    %3 = arith.truncf %0 : vector<8x128xf32> to vector<8x128xbf16>
    %cst = arith.constant dense<0.000000e+00> : vector<8x128xf32>
    %4 = tpu.matmul %3, %1, %cst {dimension_numbers = #tpu.dot_dimension_numbers<[1], [0], [0], [1], [0, 0, 1, 1], [], []>} : vector<8x128xbf16>, vector<128x128xbf16>, vector<8x128xf32> -> vector<8x128xf32>
    %5 = vector.broadcast %2 : vector<1x128xf32> to vector<8x128xf32>
    %6 = arith.addf %4, %5 : vector<8x128xf32>
    %cst_5 = arith.constant 0.000000e+00 : f32
    %7 = vector.broadcast %cst_5 : f32 to vector<8x128xf32>
    %8 = arith.maximumf %6, %7 : vector<8x128xf32>
    %c0_6 = arith.constant 0 : index
    %c0_7 = arith.constant 0 : index
    %9 = vector.load %arg4[%c0_6, %c0_7] : memref<128x128xbf16, #tpu.memory_space<vmem>>, vector<128x128xbf16>
    %c0_8 = arith.constant 0 : index
    %c0_9 = arith.constant 0 : index
    %10 = vector.load %arg5[%c0_8, %c0_9] : memref<1x128xf32, #tpu.memory_space<vmem>>, vector<1x128xf32>
    %11 = arith.truncf %8 : vector<8x128xf32> to vector<8x128xbf16>
    %cst_10 = arith.constant dense<0.000000e+00> : vector<8x128xf32>
    %12 = tpu.matmul %11, %9, %cst_10 {dimension_numbers = #tpu.dot_dimension_numbers<[1], [0], [0], [1], [0, 0, 1, 1], [], []>} : vector<8x128xbf16>, vector<128x128xbf16>, vector<8x128xf32> -> vector<8x128xf32>
    %13 = vector.broadcast %10 : vector<1x128xf32> to vector<8x128xf32>
    %14 = arith.addf %12, %13 : vector<8x128xf32>
    %cst_11 = arith.constant 0.000000e+00 : f32
    %15 = vector.broadcast %cst_11 : f32 to vector<8x128xf32>
    %16 = arith.maximumf %14, %15 : vector<8x128xf32>
    %c0_12 = arith.constant 0 : index
    %c0_13 = arith.constant 0 : index
    %17 = vector.load %arg6[%c0_12, %c0_13] : memref<128x128xbf16, #tpu.memory_space<vmem>>, vector<128x128xbf16>
    %c0_14 = arith.constant 0 : index
    %c0_15 = arith.constant 0 : index
    %18 = vector.load %arg7[%c0_14, %c0_15] : memref<1x128xf32, #tpu.memory_space<vmem>>, vector<1x128xf32>
    %19 = arith.truncf %16 : vector<8x128xf32> to vector<8x128xbf16>
    %cst_16 = arith.constant dense<0.000000e+00> : vector<8x128xf32>
    %20 = tpu.matmul %19, %17, %cst_16 {dimension_numbers = #tpu.dot_dimension_numbers<[1], [0], [0], [1], [0, 0, 1, 1], [], []>} : vector<8x128xbf16>, vector<128x128xbf16>, vector<8x128xf32> -> vector<8x128xf32>
    %21 = vector.broadcast %18 : vector<1x128xf32> to vector<8x128xf32>
    %22 = arith.addf %20, %21 : vector<8x128xf32>
    %cst_17 = arith.constant 0.000000e+00 : f32
    %23 = vector.broadcast %cst_17 : f32 to vector<8x128xf32>
    %24 = arith.maximumf %22, %23 : vector<8x128xf32>
    %c0_18 = arith.constant 0 : index
    %c0_19 = arith.constant 0 : index
    %25 = vector.load %arg15[%c0_18, %c0_19] : memref<8x128xf32, #tpu.memory_space<vmem>>, vector<8x128xf32>
    tpu.vector_store %arg15[%c0_18, %c0_19], %24 {strides = array<i32>} : memref<8x128xf32, #tpu.memory_space<vmem>>, vector<8x128xf32>,
    %c0_20 = arith.constant 0 : index
    %c0_21 = arith.constant 0 : index
    %26 = vector.load %arg8[%c0_20, %c0_21] : memref<128x128xbf16, #tpu.memory_space<vmem>>, vector<128x128xbf16>
    %c0_22 = arith.constant 0 : index
    %c0_23 = arith.constant 0 : index
    %27 = vector.load %arg9[%c0_22, %c0_23] : memref<1x128xf32, #tpu.memory_space<vmem>>, vector<1x128xf32>
    %28 = arith.truncf %24 : vector<8x128xf32> to vector<8x128xbf16>
    %cst_24 = arith.constant dense<0.000000e+00> : vector<8x128xf32>
    %29 = tpu.matmul %28, %26, %cst_24 {dimension_numbers = #tpu.dot_dimension_numbers<[1], [0], [0], [1], [0, 0, 1, 1], [], []>} : vector<8x128xbf16>, vector<128x128xbf16>, vector<8x128xf32> -> vector<8x128xf32>
    %30 = vector.broadcast %27 : vector<1x128xf32> to vector<8x128xf32>
    %31 = arith.addf %29, %30 : vector<8x128xf32>
    %cst_25 = arith.constant 0.000000e+00 : f32
    %32 = vector.broadcast %cst_25 : f32 to vector<8x128xf32>
    %33 = arith.maximumf %31, %32 : vector<8x128xf32>
    %c0_26 = arith.constant 0 : index
    %c0_27 = arith.constant 0 : index
    %34 = vector.load %arg10[%c0_26, %c0_27] : memref<128x128xbf16, #tpu.memory_space<vmem>>, vector<128x128xbf16>
    %c0_28 = arith.constant 0 : index
    %c0_29 = arith.constant 0 : index
    %35 = vector.load %arg11[%c0_28, %c0_29] : memref<1x128xf32, #tpu.memory_space<vmem>>, vector<1x128xf32>
    %36 = arith.truncf %33 : vector<8x128xf32> to vector<8x128xbf16>
    %cst_30 = arith.constant dense<0.000000e+00> : vector<8x128xf32>
    %37 = tpu.matmul %36, %34, %cst_30 {dimension_numbers = #tpu.dot_dimension_numbers<[1], [0], [0], [1], [0, 0, 1, 1], [], []>} : vector<8x128xbf16>, vector<128x128xbf16>, vector<8x128xf32> -> vector<8x128xf32>
    %38 = vector.broadcast %35 : vector<1x128xf32> to vector<8x128xf32>
    %39 = arith.addf %37, %38 : vector<8x128xf32>
    %cst_31 = arith.constant 0.000000e+00 : f32
    %40 = vector.broadcast %cst_31 : f32 to vector<8x128xf32>
    %41 = arith.maximumf %39, %40 : vector<8x128xf32>
    %c0_32 = arith.constant 0 : index
    %c0_33 = arith.constant 0 : index
    %42 = vector.load %arg12[%c0_32, %c0_33] : memref<128x128xbf16, #tpu.memory_space<vmem>>, vector<128x128xbf16>
    %c0_34 = arith.constant 0 : index
    %c0_35 = arith.constant 0 : index
    %43 = vector.load %arg13[%c0_34, %c0_35] : memref<1x128xf32, #tpu.memory_space<vmem>>, vector<1x128xf32>
    %44 = arith.truncf %41 : vector<8x128xf32> to vector<8x128xbf16>
    %cst_36 = arith.constant dense<0.000000e+00> : vector<8x128xf32>
    %45 = tpu.matmul %44, %42, %cst_36 {dimension_numbers = #tpu.dot_dimension_numbers<[1], [0], [0], [1], [0, 0, 1, 1], [], []>} : vector<8x128xbf16>, vector<128x128xbf16>, vector<8x128xf32> -> vector<8x128xf32>
    %46 = vector.broadcast %43 : vector<1x128xf32> to vector<8x128xf32>
    %47 = arith.addf %45, %46 : vector<8x128xf32>
    %48 = math.absf %47 : vector<8x128xf32>
    %cst_37 = arith.constant 0.000000e+00 : f32
    %49 = vector.broadcast %cst_37 : f32 to vector<8x128xf32>
    %50 = arith.subf %49, %48 : vector<8x128xf32>
    %51 = math.exp %50 : vector<8x128xf32>
    %cst_38 = arith.constant 1.000000e+00 : f32
    %52 = vector.broadcast %cst_38 : f32 to vector<8x128xf32>
    %53 = arith.addf %52, %51 : vector<8x128xf32>
    %54 = tpu.reciprocal %53 {approx = true} : vector<8x128xf32> -> vector<8x128xf32>
    %cst_39 = arith.constant 0.000000e+00 : f32
    %55 = vector.broadcast %cst_39 : f32 to vector<8x128xf32>
    %56 = arith.cmpf oge, %47, %55 : vector<8x128xf32>
    %57 = arith.mulf %51, %54 : vector<8x128xf32>
    %58 = arith.select %56, %54, %57 : vector<8x128xi1>, vector<8x128xf32>
    %c0_40 = arith.constant 0 : index
    %c0_41 = arith.constant 0 : index
    %59 = vector.load %arg14[%c0_40, %c0_41] : memref<8x128xf32, #tpu.memory_space<vmem>>, vector<8x128xf32>
    tpu.vector_store %arg14[%c0_40, %c0_41], %58 {strides = array<i32>} : memref<8x128xf32, #tpu.memory_space<vmem>>, vector<8x128xf32>,
    return
  }
  func.func @transform_0(%arg0: i32) -> (i32, i32) {
    %c0_i32 = arith.constant 0 : i32
    %c0_i32_0 = arith.constant 0 : i32
    return %arg0, %c0_i32 : i32, i32
  }
  func.func @transform_1(%arg0: i32) -> (i32, i32) {
    %c0_i32 = arith.constant 0 : i32
    %c0_i32_0 = arith.constant 0 : i32
    %c0_i32_1 = arith.constant 0 : i32
    return %c0_i32, %c0_i32_0 : i32, i32
  }
  func.func @transform_2(%arg0: i32) -> (i32, i32) {
    %c0_i32 = arith.constant 0 : i32
    %c0_i32_0 = arith.constant 0 : i32
    %c0_i32_1 = arith.constant 0 : i32
    return %c0_i32, %c0_i32_0 : i32, i32
  }
  func.func @transform_3(%arg0: i32) -> (i32, i32) {
    %c0_i32 = arith.constant 0 : i32
    %c0_i32_0 = arith.constant 0 : i32
    %c0_i32_1 = arith.constant 0 : i32
    return %c0_i32, %c0_i32_0 : i32, i32
  }
  func.func @transform_4(%arg0: i32) -> (i32, i32) {
    %c0_i32 = arith.constant 0 : i32
    %c0_i32_0 = arith.constant 0 : i32
    %c0_i32_1 = arith.constant 0 : i32
    return %c0_i32, %c0_i32_0 : i32, i32
  }
  func.func @transform_5(%arg0: i32) -> (i32, i32) {
    %c0_i32 = arith.constant 0 : i32
    %c0_i32_0 = arith.constant 0 : i32
    %c0_i32_1 = arith.constant 0 : i32
    return %c0_i32, %c0_i32_0 : i32, i32
  }
  func.func @transform_6(%arg0: i32) -> (i32, i32) {
    %c0_i32 = arith.constant 0 : i32
    %c0_i32_0 = arith.constant 0 : i32
    %c0_i32_1 = arith.constant 0 : i32
    return %c0_i32, %c0_i32_0 : i32, i32
  }
  func.func @transform_7(%arg0: i32) -> (i32, i32) {
    %c0_i32 = arith.constant 0 : i32
    %c0_i32_0 = arith.constant 0 : i32
    %c0_i32_1 = arith.constant 0 : i32
    return %c0_i32, %c0_i32_0 : i32, i32
  }
  func.func @transform_8(%arg0: i32) -> (i32, i32) {
    %c0_i32 = arith.constant 0 : i32
    %c0_i32_0 = arith.constant 0 : i32
    %c0_i32_1 = arith.constant 0 : i32
    return %c0_i32, %c0_i32_0 : i32, i32
  }
  func.func @transform_9(%arg0: i32) -> (i32, i32) {
    %c0_i32 = arith.constant 0 : i32
    %c0_i32_0 = arith.constant 0 : i32
    %c0_i32_1 = arith.constant 0 : i32
    return %c0_i32, %c0_i32_0 : i32, i32
  }
  func.func @transform_10(%arg0: i32) -> (i32, i32) {
    %c0_i32 = arith.constant 0 : i32
    %c0_i32_0 = arith.constant 0 : i32
    %c0_i32_1 = arith.constant 0 : i32
    return %c0_i32, %c0_i32_0 : i32, i32
  }
  func.func @transform_11(%arg0: i32) -> (i32, i32) {
    %c0_i32 = arith.constant 0 : i32
    %c0_i32_0 = arith.constant 0 : i32
    %c0_i32_1 = arith.constant 0 : i32
    return %c0_i32, %c0_i32_0 : i32, i32
  }
  func.func @transform_12(%arg0: i32) -> (i32, i32) {
    %c0_i32 = arith.constant 0 : i32
    %c0_i32_0 = arith.constant 0 : i32
    %c0_i32_1 = arith.constant 0 : i32
    return %c0_i32, %c0_i32_0 : i32, i32
  }
  func.func @transform_13(%arg0: i32) -> (i32, i32) {
    %c0_i32 = arith.constant 0 : i32
    %c0_i32_0 = arith.constant 0 : i32
    return %arg0, %c0_i32 : i32, i32
  }
  func.func @transform_14(%arg0: i32) -> (i32, i32) {
    %c0_i32 = arith.constant 0 : i32
    %c0_i32_0 = arith.constant 0 : i32
    return %arg0, %c0_i32 : i32, i32
  }
}

</mosaic_0001>

<llo_original>
// kernel: tpu_custom_call.1
$region0: #{tpu_custom_call.1}
  #allocation0 [shape = 'u32[]', space=smem, size = 0x4, offset = 0x4, fixed_abs, tag = 'smem constant byte address 0x4 - core index']
  #allocation1 [shape = 'u32[144,128]{1,0:T(1,128)}', space=vmem, size = 0x12000, scoped, tag = 'internal scratch']
  %s0 = inlined_call_operand.hbm [shape: f32[8,128], index: 0, kind: input, shape index: {}]
  %s1 = inlined_call_operand.hbm [shape: bf16[128,128], index: 1, kind: input, shape index: {}]
  %s2 = inlined_call_operand.vmem [shape: f32[1,128], index: 2, kind: input, shape index: {}]
  %s3 = inlined_call_operand.hbm [shape: bf16[128,128], index: 3, kind: input, shape index: {}]
  %s4 = inlined_call_operand.vmem [shape: f32[1,128], index: 4, kind: input, shape index: {}]
  %s5 = inlined_call_operand.hbm [shape: bf16[128,128], index: 5, kind: input, shape index: {}]
  %s6 = inlined_call_operand.vmem [shape: f32[1,128], index: 6, kind: input, shape index: {}]
  %s7 = inlined_call_operand.hbm [shape: bf16[128,128], index: 7, kind: input, shape index: {}]
  %s8 = inlined_call_operand.vmem [shape: f32[1,128], index: 8, kind: input, shape index: {}]
  %s9 = inlined_call_operand.hbm [shape: bf16[128,128], index: 9, kind: input, shape index: {}]
  %s10 = inlined_call_operand.vmem [shape: f32[1,128], index: 10, kind: input, shape index: {}]
  %s11 = inlined_call_operand.hbm [shape: bf16[128,128], index: 11, kind: input, shape index: {}]
  %s12 = inlined_call_operand.vmem [shape: f32[1,128], index: 12, kind: input, shape index: {}]
  %s13 = inlined_call_operand.hbm [shape: f32[8,128], index: 13, kind: output, shape index: {0}]
  %s14 = inlined_call_operand.hbm [shape: f32[8,128], index: 14, kind: output, shape index: {1}]
  %15 = xla_tuple %s13, %s14
  %s16 = sld [smem:[#allocation0]]
  $region98: #{tpu_custom_call.1} parent=0
    _
  %s18 = ssub.s32 1, %s16
  %s19 = scalar_select 0, %s18, %s16
  $region1: #{tpu_custom_call.1} parent=0
    #allocation2 [shape = 'u8[4096]{0}', space=vmem, size = 0x1000, scoped, tag = 'input window, operand 0, single buffered']
    #allocation3 [shape = 's32[1]{0}', space=sflag, size = 0x4, scoped, tag = 'scoped memory for tpu_custom_call.1']
    #allocation4 [shape = 's32[1]{0}', space=sflag, size = 0x4, scoped, tag = 'scoped memory for tpu_custom_call.1']
    #allocation5 [shape = 'u8[32768]{0}', space=vmem, size = 0x8000, scoped, tag = 'input window, operand 1, single buffered']
    #allocation6 [shape = 's32[1]{0}', space=sflag, size = 0x4, scoped, tag = 'scoped memory for tpu_custom_call.1']
    #allocation7 [shape = 'u8[32768]{0}', space=vmem, size = 0x8000, scoped, tag = 'input window, operand 3, single buffered']
    #allocation8 [shape = 'u8[32768]{0}', space=vmem, size = 0x8000, scoped, tag = 'input window, operand 5, single buffered']
    #allocation9 [shape = 's32[1]{0}', space=sflag, size = 0x4, scoped, tag = 'scoped memory for tpu_custom_call.1']
    #allocation10 [shape = 'u8[32768]{0}', space=vmem, size = 0x8000, scoped, tag = 'input window, operand 7, single buffered']
    #allocation11 [shape = 'u8[32768]{0}', space=vmem, size = 0x8000, scoped, tag = 'input window, operand 9, single buffered']
    #allocation12 [shape = 's32[1]{0}', space=sflag, size = 0x4, scoped, tag = 'scoped memory for tpu_custom_call.1']
    #allocation13 [shape = 'u8[32768]{0}', space=vmem, size = 0x8000, scoped, tag = 'input window, operand 11, single buffered']
    #allocation14 [shape = 'u8[4096]{0}', space=vmem, size = 0x1000, scoped, tag = 'output window, operand 0, single buffered']
    #allocation15 [shape = 'u8[4096]{0}', space=vmem, size = 0x1000, scoped, tag = 'output window, operand 1, single buffered']
    #allocation16 [shape = 's32[1]{0}', space=sflag, size = 0x4, scoped, tag = 'scoped memory for tpu_custom_call.1']
    %20 = vsyncpa [#allocation3], 0
    %21 = vsyncpa [#allocation6], 0
    %22 = vsyncpa [#allocation9], 0
    %23 = vsyncpa [#allocation12], 0
    %24 = vsyncpa [#allocation4], 0
    %25 = vsyncpa [#allocation16], 0
    // Predicated region
    $region2: #{tpu_custom_call.1} parent=1 // pred_check
      _
    $region3: #{tpu_custom_call.1} parent=1 // pred_check_branch
      %27 = sbr.rel (0) target = $region5
    $region4: #{tpu_custom_call.1} parent=1 // pred_region
      %s29 = ssub.s32 128, 128
      %30 = vsyncadd [#allocation3], %s29
      %s32 = sshll.u32 [#allocation2], 4
      %s33 = int_to_ptr.vmem [resolvable:$true] %s32
      %35 = dma.hbm_to_vmem [thread:$0]  %s0, 128, %s33, [#allocation3]
    $region5: #{tpu_custom_call.1} parent=1 // pred_fallthru
      _
    // Predicated region
    $region6: #{tpu_custom_call.1} parent=1 // pred_check
      _
    $region7: #{tpu_custom_call.1} parent=1 // pred_check_branch
      %37 = sbr.rel (0) target = $region9
    $region8: #{tpu_custom_call.1} parent=1 // pred_region
      %s39 = ssub.s32 1024, 1024
      %40 = vsyncadd [#allocation6], %s39
      %s41 = sshll.u32 [#allocation5], 4
      %s42 = int_to_ptr.vmem [resolvable:$true] %s41
      %47 = dma.hbm_to_vmem [thread:$0]  %s1, 1024, %s42, [#allocation6], 64, 64, 4
    $region9: #{tpu_custom_call.1} parent=1 // pred_fallthru
      _
    // Predicated region
    $region10: #{tpu_custom_call.1} parent=1 // pred_check
      _
    $region11: #{tpu_custom_call.1} parent=1 // pred_check_branch
      %49 = sbr.rel (0) target = $region13
    $region12: #{tpu_custom_call.1} parent=1 // pred_region
      _
    $region13: #{tpu_custom_call.1} parent=1 // pred_fallthru
      _
    // Predicated region
    $region14: #{tpu_custom_call.1} parent=1 // pred_check
      _
    $region15: #{tpu_custom_call.1} parent=1 // pred_check_branch
      %51 = sbr.rel (0) target = $region17
    $region16: #{tpu_custom_call.1} parent=1 // pred_region
      %s53 = ssub.s32 1024, 1024
      %54 = vsyncadd [#allocation6], %s53
      %s55 = sshll.u32 [#allocation7], 4
      %s56 = int_to_ptr.vmem [resolvable:$true] %s55
      %61 = dma.hbm_to_vmem [thread:$0]  %s3, 1024, %s56, [#allocation6], 64, 64, 4
    $region17: #{tpu_custom_call.1} parent=1 // pred_fallthru
      _
    // Predicated region
    $region18: #{tpu_custom_call.1} parent=1 // pred_check
      _
    $region19: #{tpu_custom_call.1} parent=1 // pred_check_branch
      %63 = sbr.rel (0) target = $region21
    $region20: #{tpu_custom_call.1} parent=1 // pred_region
      _
    $region21: #{tpu_custom_call.1} parent=1 // pred_fallthru
      _
    // Predicated region
    $region22: #{tpu_custom_call.1} parent=1 // pred_check
      _
    $region23: #{tpu_custom_call.1} parent=1 // pred_check_branch
      %65 = sbr.rel (0) target = $region25
    $region24: #{tpu_custom_call.1} parent=1 // pred_region
      %s67 = ssub.s32 1024, 1024
      %68 = vsyncadd [#allocation9], %s67
      %s69 = sshll.u32 [#allocation8], 4
      %s70 = int_to_ptr.vmem [resolvable:$true] %s69
      %75 = dma.hbm_to_vmem [thread:$0]  %s5, 1024, %s70, [#allocation9], 64, 64, 4
    $region25: #{tpu_custom_call.1} parent=1 // pred_fallthru
      _
    // Predicated region
    $region26: #{tpu_custom_call.1} parent=1 // pred_check
      _
    $region27: #{tpu_custom_call.1} parent=1 // pred_check_branch
      %77 = sbr.rel (0) target = $region29
    $region28: #{tpu_custom_call.1} parent=1 // pred_region
      _
    $region29: #{tpu_custom_call.1} parent=1 // pred_fallthru
      _
    // Predicated region
    $region30: #{tpu_custom_call.1} parent=1 // pred_check
      _
    $region31: #{tpu_custom_call.1} parent=1 // pred_check_branch
      %79 = sbr.rel (0) target = $region33
    $region32: #{tpu_custom_call.1} parent=1 // pred_region
      %s81 = ssub.s32 1024, 1024
      %82 = vsyncadd [#allocation9], %s81
      %s83 = sshll.u32 [#allocation10], 4
      %s84 = int_to_ptr.vmem [resolvable:$true] %s83
      %89 = dma.hbm_to_vmem [thread:$0]  %s7, 1024, %s84, [#allocation9], 64, 64, 4
    $region33: #{tpu_custom_call.1} parent=1 // pred_fallthru
      _
    // Predicated region
    $region34: #{tpu_custom_call.1} parent=1 // pred_check
      _
    $region35: #{tpu_custom_call.1} parent=1 // pred_check_branch
      %91 = sbr.rel (0) target = $region37
    $region36: #{tpu_custom_call.1} parent=1 // pred_region
      _
    $region37: #{tpu_custom_call.1} parent=1 // pred_fallthru
      _
    // Predicated region
    $region38: #{tpu_custom_call.1} parent=1 // pred_check
      _
    $region39: #{tpu_custom_call.1} parent=1 // pred_check_branch
      %93 = sbr.rel (0) target = $region41
    $region40: #{tpu_custom_call.1} parent=1 // pred_region
      %s95 = ssub.s32 1024, 1024
      %96 = vsyncadd [#allocation12], %s95
      %s97 = sshll.u32 [#allocation11], 4
      %s98 = int_to_ptr.vmem [resolvable:$true] %s97
      %103 = dma.hbm_to_vmem [thread:$0]  %s9, 1024, %s98, [#allocation12], 64, 64, 4
    $region41: #{tpu_custom_call.1} parent=1 // pred_fallthru
      _
    // Predicated region
    $region42: #{tpu_custom_call.1} parent=1 // pred_check
      _
    $region43: #{tpu_custom_call.1} parent=1 // pred_check_branch
      %105 = sbr.rel (0) target = $region45
    $region44: #{tpu_custom_call.1} parent=1 // pred_region
      _
    $region45: #{tpu_custom_call.1} parent=1 // pred_fallthru
      _
    // Predicated region
    $region46: #{tpu_custom_call.1} parent=1 // pred_check
      _
    $region47: #{tpu_custom_call.1} parent=1 // pred_check_branch
      %107 = sbr.rel (0) target = $region49
    $region48: #{tpu_custom_call.1} parent=1 // pred_region
      %s109 = ssub.s32 1024, 1024
      %110 = vsyncadd [#allocation12], %s109
      %s111 = sshll.u32 [#allocation13], 4
      %s112 = int_to_ptr.vmem [resolvable:$true] %s111
      %117 = dma.hbm_to_vmem [thread:$0]  %s11, 1024, %s112, [#allocation12], 64, 64, 4
    $region49: #{tpu_custom_call.1} parent=1 // pred_fallthru
      _
    // Predicated region
    $region50: #{tpu_custom_call.1} parent=1 // pred_check
      _
    $region51: #{tpu_custom_call.1} parent=1 // pred_check_branch
      %119 = sbr.rel (0) target = $region53
    $region52: #{tpu_custom_call.1} parent=1 // pred_region
      _
    $region53: #{tpu_custom_call.1} parent=1 // pred_fallthru
      _
    // Predicated region
    $region54: #{tpu_custom_call.1} parent=1 // pred_check
      _
    $region55: #{tpu_custom_call.1} parent=1 // pred_check_branch
      %121 = sbr.rel (0) target = $region57
    $region56: #{tpu_custom_call.1} parent=1 // pred_region
      %122 = dma.done [#allocation3], 128
    $region57: #{tpu_custom_call.1} parent=1 // pred_fallthru
      _
    // Predicated region
    $region58: #{tpu_custom_call.1} parent=1 // pred_check
      _
    $region59: #{tpu_custom_call.1} parent=1 // pred_check_branch
      %124 = sbr.rel (0) target = $region61
    $region60: #{tpu_custom_call.1} parent=1 // pred_region
      %125 = dma.done [#allocation6], 1024
    $region61: #{tpu_custom_call.1} parent=1 // pred_fallthru
      _
    // Predicated region
    $region62: #{tpu_custom_call.1} parent=1 // pred_check
      _
    $region63: #{tpu_custom_call.1} parent=1 // pred_check_branch
      %127 = sbr.rel (0) target = $region65
    $region64: #{tpu_custom_call.1} parent=1 // pred_region
      %128 = dma.done [#allocation6], 1024
    $region65: #{tpu_custom_call.1} parent=1 // pred_fallthru
      _
    // Predicated region
    $region66: #{tpu_custom_call.1} parent=1 // pred_check
      _
    $region67: #{tpu_custom_call.1} parent=1 // pred_check_branch
      %130 = sbr.rel (0) target = $region69
    $region68: #{tpu_custom_call.1} parent=1 // pred_region
      %131 = dma.done [#allocation9], 1024
    $region69: #{tpu_custom_call.1} parent=1 // pred_fallthru
      _
    // Predicated region
    $region70: #{tpu_custom_call.1} parent=1 // pred_check
      _
    $region71: #{tpu_custom_call.1} parent=1 // pred_check_branch
      %133 = sbr.rel (0) target = $region73
    $region72: #{tpu_custom_call.1} parent=1 // pred_region
      %134 = dma.done [#allocation9], 1024
    $region73: #{tpu_custom_call.1} parent=1 // pred_fallthru
      _
    // Predicated region
    $region74: #{tpu_custom_call.1} parent=1 // pred_check
      _
    $region75: #{tpu_custom_call.1} parent=1 // pred_check_branch
      %136 = sbr.rel (0) target = $region77
    $region76: #{tpu_custom_call.1} parent=1 // pred_region
      %137 = dma.done [#allocation12], 1024
    $region77: #{tpu_custom_call.1} parent=1 // pred_fallthru
      _
    // Predicated region
    $region78: #{tpu_custom_call.1} parent=1 // pred_check
      _
    $region79: #{tpu_custom_call.1} parent=1 // pred_check_branch
      %139 = sbr.rel (0) target = $region81
    $region80: #{tpu_custom_call.1} parent=1 // pred_region
      %140 = dma.done [#allocation12], 1024
    $region81: #{tpu_custom_call.1} parent=1 // pred_fallthru
      _
    %v142 = vld [vmem:[#allocation2] sm:$0xff]
    %v143 = vld [vmem:[#allocation5] sm:$0xf]
    %v144 = vld [vmem:[#allocation5 + $0x4] sm:$0xf]
    %v145 = vld [vmem:[#allocation5 + $0x8] sm:$0xf]
    %v146 = vld [vmem:[#allocation5 + $0xc] sm:$0xf]
    %v147 = vld [vmem:[#allocation5 + $0x10] sm:$0xf]
    %v148 = vld [vmem:[#allocation5 + $0x14] sm:$0xf]
    %v149 = vld [vmem:[#allocation5 + $0x18] sm:$0xf]
    %v150 = vld [vmem:[#allocation5 + $0x1c] sm:$0xf]
    %v151 = vld [vmem:[#allocation5 + $0x20] sm:$0xf]
    %v152 = vld [vmem:[#allocation5 + $0x24] sm:$0xf]
    %v153 = vld [vmem:[#allocation5 + $0x28] sm:$0xf]
    %v154 = vld [vmem:[#allocation5 + $0x2c] sm:$0xf]
    %v155 = vld [vmem:[#allocation5 + $0x30] sm:$0xf]
    %v156 = vld [vmem:[#allocation5 + $0x34] sm:$0xf]
    %v157 = vld [vmem:[#allocation5 + $0x38] sm:$0xf]
    %v158 = vld [vmem:[#allocation5 + $0x3c] sm:$0xf]
    %v159 = vld [vmem:[%s2] sm:$0x1]
    %v160 = vpack.c.bf16 %v142, %v142
    %v162 = vlaneseq
    %v163 = vshrl.u32 %v162, 7
    %v164 = vsub.s32 0, %v163
    %v165 = vrot.slane %v159, %v164
    %v183 = vunpack.c.l.b16 %v143
    %v184 = vunpack.c.l.b16 %v144
    %v185 = vunpack.c.l.b16 %v145
    %v186 = vunpack.c.l.b16 %v146
    %v187 = vunpack.c.l.b16 %v147
    %v188 = vunpack.c.l.b16 %v148
    %v189 = vunpack.c.l.b16 %v149
    %v190 = vunpack.c.l.b16 %v150
    %v191 = vunpack.c.l.b16 %v151
    %v192 = vunpack.c.l.b16 %v152
    %v193 = vunpack.c.l.b16 %v153
    %v194 = vunpack.c.l.b16 %v154
    %v195 = vunpack.c.l.b16 %v155
    %v196 = vunpack.c.l.b16 %v156
    %v197 = vunpack.c.l.b16 %v157
    %v198 = vunpack.c.l.b16 %v158
    %v199 = vpack.c.b16 %v184, %v183
    %v200 = vpack.c.b16 %v186, %v185
    %v201 = vpack.c.b16 %v188, %v187
    %v202 = vpack.c.b16 %v190, %v189
    %v203 = vpack.c.b16 %v192, %v191
    %v204 = vpack.c.b16 %v194, %v193
    %v205 = vpack.c.b16 %v196, %v195
    %v206 = vpack.c.b16 %v198, %v197
    %215 = vmatprep.subr.bf16.mxu0 0
    %216 = vmatpush1.bf16.msra.mxu0 %v199
    %217 = vmatprep.subr.bf16.mxu0 0
    %218 = vmatpush1.bf16.msra.mxu0 %v200
    %219 = vmatprep.subr.bf16.mxu0 0
    %220 = vmatpush1.bf16.msra.mxu0 %v201
    %221 = vmatprep.subr.bf16.mxu0 0
    %222 = vmatpush1.bf16.msra.mxu0 %v202
    %223 = vmatprep.subr.bf16.mxu0 0
    %224 = vmatpush1.bf16.msra.mxu0 %v203
    %225 = vmatprep.subr.bf16.mxu0 0
    %226 = vmatpush1.bf16.msra.mxu0 %v204
    %227 = vmatprep.subr.bf16.mxu0 0
    %228 = vmatpush1.bf16.msra.mxu0 %v205
    %229 = vmatprep.subr.bf16.mxu0 0
    %230 = vmatpush1.bf16.msra.mxu0 %v206
    %231 = vmatprep.subr.bf16.mxu0 0
    %232 = vmatpush1.bf16.msra.mxu0 0
    %233 = vmatprep.subr.bf16.mxu0 0
    %234 = vmatpush1.bf16.msra.mxu0 0
    %235 = vmatprep.subr.bf16.mxu0 0
    %236 = vmatpush1.bf16.msra.mxu0 0
    %237 = vmatprep.subr.bf16.mxu0 0
    %238 = vmatpush1.bf16.msra.mxu0 0
    %239 = vmatprep.subr.bf16.mxu0 0
    %240 = vmatpush1.bf16.msra.mxu0 0
    %241 = vmatprep.subr.bf16.mxu0 0
    %242 = vmatpush1.bf16.msra.mxu0 0
    %243 = vmatprep.subr.bf16.mxu0 0
    %244 = vmatpush1.bf16.msra.mxu0 0
    %245 = vmatprep.subr.bf16.mxu0 0
    %246 = vmatpush1.bf16.msra.mxu0 0
    %247 = vmatprep.mubr.bf16.mxu0 0
    %248 = vmatmul.mubr.bf16.gmra.mrb[0].mxu0 %v160
    %v249 = vpop.f32.mrb[0].mxu0
    %v250 = vadd.f32 %v165, %v249
    %v251 = vpop.f32.mrb[0].mxu0
    %v252 = vpop.f32.mrb[0].mxu0
    %v253 = vpop.f32.mrb[0].mxu0
    %254 = vdwg.mxu0
    %v255 = vmax.f32 %v250, 0.0
    %v256 = vld [vmem:[#allocation7] sm:$0xf]
    %v257 = vld [vmem:[#allocation7 + $0x4] sm:$0xf]
    %v258 = vld [vmem:[#allocation7 + $0x8] sm:$0xf]
    %v259 = vld [vmem:[#allocation7 + $0xc] sm:$0xf]
    %v260 = vld [vmem:[#allocation7 + $0x10] sm:$0xf]
    %v261 = vld [vmem:[#allocation7 + $0x14] sm:$0xf]
    %v262 = vld [vmem:[#allocation7 + $0x18] sm:$0xf]
    %v263 = vld [vmem:[#allocation7 + $0x1c] sm:$0xf]
    %v264 = vld [vmem:[#allocation7 + $0x20] sm:$0xf]
    %v265 = vld [vmem:[#allocation7 + $0x24] sm:$0xf]
    %v266 = vld [vmem:[#allocation7 + $0x28] sm:$0xf]
    %v267 = vld [vmem:[#allocation7 + $0x2c] sm:$0xf]
    %v268 = vld [vmem:[#allocation7 + $0x30] sm:$0xf]
    %v269 = vld [vmem:[#allocation7 + $0x34] sm:$0xf]
    %v270 = vld [vmem:[#allocation7 + $0x38] sm:$0xf]
    %v271 = vld [vmem:[#allocation7 + $0x3c] sm:$0xf]
    %v272 = vld [vmem:[%s4] sm:$0x1]
    %v273 = vpack.c.bf16 %v255, %v255
    %v275 = vlaneseq
    %v276 = vshrl.u32 %v275, 7
    %v277 = vsub.s32 0, %v276
    %v278 = vrot.slane %v272, %v277
    %v296 = vunpack.c.l.b16 %v256
    %v297 = vunpack.c.l.b16 %v257
    %v298 = vunpack.c.l.b16 %v258
    %v299 = vunpack.c.l.b16 %v259
    %v300 = vunpack.c.l.b16 %v260
    %v301 = vunpack.c.l.b16 %v261
    %v302 = vunpack.c.l.b16 %v262
    %v303 = vunpack.c.l.b16 %v263
    %v304 = vunpack.c.l.b16 %v264
    %v305 = vunpack.c.l.b16 %v265
    %v306 = vunpack.c.l.b16 %v266
    %v307 = vunpack.c.l.b16 %v267
    %v308 = vunpack.c.l.b16 %v268
    %v309 = vunpack.c.l.b16 %v269
    %v310 = vunpack.c.l.b16 %v270
    %v311 = vunpack.c.l.b16 %v271
    %v312 = vpack.c.b16 %v297, %v296
    %v313 = vpack.c.b16 %v299, %v298
    %v314 = vpack.c.b16 %v301, %v300
    %v315 = vpack.c.b16 %v303, %v302
    %v316 = vpack.c.b16 %v305, %v304
    %v317 = vpack.c.b16 %v307, %v306
    %v318 = vpack.c.b16 %v309, %v308
    %v319 = vpack.c.b16 %v311, %v310
    %328 = vmatprep.subr.bf16.mxu0 0
    %329 = vmatpush1.bf16.msra.mxu0 %v312
    %330 = vmatprep.subr.bf16.mxu0 0
    %331 = vmatpush1.bf16.msra.mxu0 %v313
    %332 = vmatprep.subr.bf16.mxu0 0
    %333 = vmatpush1.bf16.msra.mxu0 %v314
    %334 = vmatprep.subr.bf16.mxu0 0
    %335 = vmatpush1.bf16.msra.mxu0 %v315
    %336 = vmatprep.subr.bf16.mxu0 0
    %337 = vmatpush1.bf16.msra.mxu0 %v316
    %338 = vmatprep.subr.bf16.mxu0 0
    %339 = vmatpush1.bf16.msra.mxu0 %v317
    %340 = vmatprep.subr.bf16.mxu0 0
    %341 = vmatpush1.bf16.msra.mxu0 %v318
    %342 = vmatprep.subr.bf16.mxu0 0
    %343 = vmatpush1.bf16.msra.mxu0 %v319
    %344 = vmatprep.subr.bf16.mxu0 0
    %345 = vmatpush1.bf16.msra.mxu0 0
    %346 = vmatprep.subr.bf16.mxu0 0
    %347 = vmatpush1.bf16.msra.mxu0 0
    %348 = vmatprep.subr.bf16.mxu0 0
    %349 = vmatpush1.bf16.msra.mxu0 0
    %350 = vmatprep.subr.bf16.mxu0 0
    %351 = vmatpush1.bf16.msra.mxu0 0
    %352 = vmatprep.subr.bf16.mxu0 0
    %353 = vmatpush1.bf16.msra.mxu0 0
    %354 = vmatprep.subr.bf16.mxu0 0
    %355 = vmatpush1.bf16.msra.mxu0 0
    %356 = vmatprep.subr.bf16.mxu0 0
    %357 = vmatpush1.bf16.msra.mxu0 0
    %358 = vmatprep.subr.bf16.mxu0 0
    %359 = vmatpush1.bf16.msra.mxu0 0
    %360 = vmatprep.mubr.bf16.mxu0 0
    %361 = vmatmul.mubr.bf16.gmra.mrb[0].mxu0 %v273
    %v362 = vpop.f32.mrb[0].mxu0
    %v363 = vadd.f32 %v278, %v362
    %v364 = vpop.f32.mrb[0].mxu0
    %v365 = vpop.f32.mrb[0].mxu0
    %v366 = vpop.f32.mrb[0].mxu0
    %367 = vdwg.mxu0
    %v368 = vmax.f32 %v363, 0.0
    %v369 = vld [vmem:[#allocation8] sm:$0xf]
    %v370 = vld [vmem:[#allocation8 + $0x4] sm:$0xf]
    %v371 = vld [vmem:[#allocation8 + $0x8] sm:$0xf]
    %v372 = vld [vmem:[#allocation8 + $0xc] sm:$0xf]
    %v373 = vld [vmem:[#allocation8 + $0x10] sm:$0xf]
    %v374 = vld [vmem:[#allocation8 + $0x14] sm:$0xf]
    %v375 = vld [vmem:[#allocation8 + $0x18] sm:$0xf]
    %v376 = vld [vmem:[#allocation8 + $0x1c] sm:$0xf]
    %v377 = vld [vmem:[#allocation8 + $0x20] sm:$0xf]
    %v378 = vld [vmem:[#allocation8 + $0x24] sm:$0xf]
    %v379 = vld [vmem:[#allocation8 + $0x28] sm:$0xf]
    %v380 = vld [vmem:[#allocation8 + $0x2c] sm:$0xf]
    %v381 = vld [vmem:[#allocation8 + $0x30] sm:$0xf]
    %v382 = vld [vmem:[#allocation8 + $0x34] sm:$0xf]
    %v383 = vld [vmem:[#allocation8 + $0x38] sm:$0xf]
    %v384 = vld [vmem:[#allocation8 + $0x3c] sm:$0xf]
    %v385 = vld [vmem:[%s6] sm:$0x1]
    %v386 = vpack.c.bf16 %v368, %v368
    %v388 = vlaneseq
    %v389 = vshrl.u32 %v388, 7
    %v390 = vsub.s32 0, %v389
    %v391 = vrot.slane %v385, %v390
    %v409 = vunpack.c.l.b16 %v369
    %v410 = vunpack.c.l.b16 %v370
    %v411 = vunpack.c.l.b16 %v371
    %v412 = vunpack.c.l.b16 %v372
    %v413 = vunpack.c.l.b16 %v373
    %v414 = vunpack.c.l.b16 %v374
    %v415 = vunpack.c.l.b16 %v375
    %v416 = vunpack.c.l.b16 %v376
    %v417 = vunpack.c.l.b16 %v377
    %v418 = vunpack.c.l.b16 %v378
    %v419 = vunpack.c.l.b16 %v379
    %v420 = vunpack.c.l.b16 %v380
    %v421 = vunpack.c.l.b16 %v381
    %v422 = vunpack.c.l.b16 %v382
    %v423 = vunpack.c.l.b16 %v383
    %v424 = vunpack.c.l.b16 %v384
    %v425 = vpack.c.b16 %v410, %v409
    %v426 = vpack.c.b16 %v412, %v411
    %v427 = vpack.c.b16 %v414, %v413
    %v428 = vpack.c.b16 %v416, %v415
    %v429 = vpack.c.b16 %v418, %v417
    %v430 = vpack.c.b16 %v420, %v419
    %v431 = vpack.c.b16 %v422, %v421
    %v432 = vpack.c.b16 %v424, %v423
    %441 = vmatprep.subr.bf16.mxu0 0
    %442 = vmatpush1.bf16.msra.mxu0 %v425
    %443 = vmatprep.subr.bf16.mxu0 0
    %444 = vmatpush1.bf16.msra.mxu0 %v426
    %445 = vmatprep.subr.bf16.mxu0 0
    %446 = vmatpush1.bf16.msra.mxu0 %v427
    %447 = vmatprep.subr.bf16.mxu0 0
    %448 = vmatpush1.bf16.msra.mxu0 %v428
    %449 = vmatprep.subr.bf16.mxu0 0
    %450 = vmatpush1.bf16.msra.mxu0 %v429
    %451 = vmatprep.subr.bf16.mxu0 0
    %452 = vmatpush1.bf16.msra.mxu0 %v430
    %453 = vmatprep.subr.bf16.mxu0 0
    %454 = vmatpush1.bf16.msra.mxu0 %v431
    %455 = vmatprep.subr.bf16.mxu0 0
    %456 = vmatpush1.bf16.msra.mxu0 %v432
    %457 = vmatprep.subr.bf16.mxu0 0
    %458 = vmatpush1.bf16.msra.mxu0 0
    %459 = vmatprep.subr.bf16.mxu0 0
    %460 = vmatpush1.bf16.msra.mxu0 0
    %461 = vmatprep.subr.bf16.mxu0 0
    %462 = vmatpush1.bf16.msra.mxu0 0
    %463 = vmatprep.subr.bf16.mxu0 0
    %464 = vmatpush1.bf16.msra.mxu0 0
    %465 = vmatprep.subr.bf16.mxu0 0
    %466 = vmatpush1.bf16.msra.mxu0 0
    %467 = vmatprep.subr.bf16.mxu0 0
    %468 = vmatpush1.bf16.msra.mxu0 0
    %469 = vmatprep.subr.bf16.mxu0 0
    %470 = vmatpush1.bf16.msra.mxu0 0
    %471 = vmatprep.subr.bf16.mxu0 0
    %472 = vmatpush1.bf16.msra.mxu0 0
    %473 = vmatprep.mubr.bf16.mxu0 0
    %474 = vmatmul.mubr.bf16.gmra.mrb[0].mxu0 %v386
    %v475 = vpop.f32.mrb[0].mxu0
    %v476 = vadd.f32 %v391, %v475
    %v477 = vpop.f32.mrb[0].mxu0
    %v478 = vpop.f32.mrb[0].mxu0
    %v479 = vpop.f32.mrb[0].mxu0
    %480 = vdwg.mxu0
    %v481 = vmax.f32 %v476, 0.0
    %482 = vst [vmem:[#allocation15] sm:$0xff] %v481
    %v483 = vld [vmem:[#allocation10] sm:$0xf]
    %v484 = vld [vmem:[#allocation10 + $0x4] sm:$0xf]
    %v485 = vld [vmem:[#allocation10 + $0x8] sm:$0xf]
    %v486 = vld [vmem:[#allocation10 + $0xc] sm:$0xf]
    %v487 = vld [vmem:[#allocation10 + $0x10] sm:$0xf]
    %v488 = vld [vmem:[#allocation10 + $0x14] sm:$0xf]
    %v489 = vld [vmem:[#allocation10 + $0x18] sm:$0xf]
    %v490 = vld [vmem:[#allocation10 + $0x1c] sm:$0xf]
    %v491 = vld [vmem:[#allocation10 + $0x20] sm:$0xf]
    %v492 = vld [vmem:[#allocation10 + $0x24] sm:$0xf]
    %v493 = vld [vmem:[#allocation10 + $0x28] sm:$0xf]
    %v494 = vld [vmem:[#allocation10 + $0x2c] sm:$0xf]
    %v495 = vld [vmem:[#allocation10 + $0x30] sm:$0xf]
    %v496 = vld [vmem:[#allocation10 + $0x34] sm:$0xf]
    %v497 = vld [vmem:[#allocation10 + $0x38] sm:$0xf]
    %v498 = vld [vmem:[#allocation10 + $0x3c] sm:$0xf]
    %v499 = vld [vmem:[%s8] sm:$0x1]
    %v500 = vpack.c.bf16 %v481, %v481
    %v502 = vlaneseq
    %v503 = vshrl.u32 %v502, 7
    %v504 = vsub.s32 0, %v503
    %v505 = vrot.slane %v499, %v504
    %v523 = vunpack.c.l.b16 %v483
    %v524 = vunpack.c.l.b16 %v484
    %v525 = vunpack.c.l.b16 %v485
    %v526 = vunpack.c.l.b16 %v486
    %v527 = vunpack.c.l.b16 %v487
    %v528 = vunpack.c.l.b16 %v488
    %v529 = vunpack.c.l.b16 %v489
    %v530 = vunpack.c.l.b16 %v490
    %v531 = vunpack.c.l.b16 %v491
    %v532 = vunpack.c.l.b16 %v492
    %v533 = vunpack.c.l.b16 %v493
    %v534 = vunpack.c.l.b16 %v494
    %v535 = vunpack.c.l.b16 %v495
    %v536 = vunpack.c.l.b16 %v496
    %v537 = vunpack.c.l.b16 %v497
    %v538 = vunpack.c.l.b16 %v498
    %v539 = vpack.c.b16 %v524, %v523
    %v540 = vpack.c.b16 %v526, %v525
    %v541 = vpack.c.b16 %v528, %v527
    %v542 = vpack.c.b16 %v530, %v529
    %v543 = vpack.c.b16 %v532, %v531
    %v544 = vpack.c.b16 %v534, %v533
    %v545 = vpack.c.b16 %v536, %v535
    %v546 = vpack.c.b16 %v538, %v537
    %555 = vmatprep.subr.bf16.mxu0 0
    %556 = vmatpush1.bf16.msra.mxu0 %v539
    %557 = vmatprep.subr.bf16.mxu0 0
    %558 = vmatpush1.bf16.msra.mxu0 %v540
    %559 = vmatprep.subr.bf16.mxu0 0
    %560 = vmatpush1.bf16.msra.mxu0 %v541
    %561 = vmatprep.subr.bf16.mxu0 0
    %562 = vmatpush1.bf16.msra.mxu0 %v542
    %563 = vmatprep.subr.bf16.mxu0 0
    %564 = vmatpush1.bf16.msra.mxu0 %v543
    %565 = vmatprep.subr.bf16.mxu0 0
    %566 = vmatpush1.bf16.msra.mxu0 %v544
    %567 = vmatprep.subr.bf16.mxu0 0
    %568 = vmatpush1.bf16.msra.mxu0 %v545
    %569 = vmatprep.subr.bf16.mxu0 0
    %570 = vmatpush1.bf16.msra.mxu0 %v546
    %571 = vmatprep.subr.bf16.mxu0 0
    %572 = vmatpush1.bf16.msra.mxu0 0
    %573 = vmatprep.subr.bf16.mxu0 0
    %574 = vmatpush1.bf16.msra.mxu0 0
    %575 = vmatprep.subr.bf16.mxu0 0
    %576 = vmatpush1.bf16.msra.mxu0 0
    %577 = vmatprep.subr.bf16.mxu0 0
    %578 = vmatpush1.bf16.msra.mxu0 0
    %579 = vmatprep.subr.bf16.mxu0 0
    %580 = vmatpush1.bf16.msra.mxu0 0
    %581 = vmatprep.subr.bf16.mxu0 0
    %582 = vmatpush1.bf16.msra.mxu0 0
    %583 = vmatprep.subr.bf16.mxu0 0
    %584 = vmatpush1.bf16.msra.mxu0 0
    %585 = vmatprep.subr.bf16.mxu0 0
    %586 = vmatpush1.bf16.msra.mxu0 0
    %587 = vmatprep.mubr.bf16.mxu0 0
    %588 = vmatmul.mubr.bf16.gmra.mrb[0].mxu0 %v500
    %v589 = vpop.f32.mrb[0].mxu0
    %v590 = vadd.f32 %v505, %v589
    %v591 = vpop.f32.mrb[0].mxu0
    %v592 = vpop.f32.mrb[0].mxu0
    %v593 = vpop.f32.mrb[0].mxu0
    %594 = vdwg.mxu0
    %v595 = vmax.f32 %v590, 0.0
    %v596 = vld [vmem:[#allocation11] sm:$0xf]
    %v597 = vld [vmem:[#allocation11 + $0x4] sm:$0xf]
    %v598 = vld [vmem:[#allocation11 + $0x8] sm:$0xf]
    %v599 = vld [vmem:[#allocation11 + $0xc] sm:$0xf]
    %v600 = vld [vmem:[#allocation11 + $0x10] sm:$0xf]
    %v601 = vld [vmem:[#allocation11 + $0x14] sm:$0xf]
    %v602 = vld [vmem:[#allocation11 + $0x18] sm:$0xf]
    %v603 = vld [vmem:[#allocation11 + $0x1c] sm:$0xf]
    %v604 = vld [vmem:[#allocation11 + $0x20] sm:$0xf]
    %v605 = vld [vmem:[#allocation11 + $0x24] sm:$0xf]
    %v606 = vld [vmem:[#allocation11 + $0x28] sm:$0xf]
    %v607 = vld [vmem:[#allocation11 + $0x2c] sm:$0xf]
    %v608 = vld [vmem:[#allocation11 + $0x30] sm:$0xf]
    %v609 = vld [vmem:[#allocation11 + $0x34] sm:$0xf]
    %v610 = vld [vmem:[#allocation11 + $0x38] sm:$0xf]
    %v611 = vld [vmem:[#allocation11 + $0x3c] sm:$0xf]
    %v612 = vld [vmem:[%s10] sm:$0x1]
    %v613 = vpack.c.bf16 %v595, %v595
    %v615 = vlaneseq
    %v616 = vshrl.u32 %v615, 7
    %v617 = vsub.s32 0, %v616
    %v618 = vrot.slane %v612, %v617
    %v636 = vunpack.c.l.b16 %v596
    %v637 = vunpack.c.l.b16 %v597
    %v638 = vunpack.c.l.b16 %v598
    %v639 = vunpack.c.l.b16 %v599
    %v640 = vunpack.c.l.b16 %v600
    %v641 = vunpack.c.l.b16 %v601
    %v642 = vunpack.c.l.b16 %v602
    %v643 = vunpack.c.l.b16 %v603
    %v644 = vunpack.c.l.b16 %v604
    %v645 = vunpack.c.l.b16 %v605
    %v646 = vunpack.c.l.b16 %v606
    %v647 = vunpack.c.l.b16 %v607
    %v648 = vunpack.c.l.b16 %v608
    %v649 = vunpack.c.l.b16 %v609
    %v650 = vunpack.c.l.b16 %v610
    %v651 = vunpack.c.l.b16 %v611
    %v652 = vpack.c.b16 %v637, %v636
    %v653 = vpack.c.b16 %v639, %v638
    %v654 = vpack.c.b16 %v641, %v640
    %v655 = vpack.c.b16 %v643, %v642
    %v656 = vpack.c.b16 %v645, %v644
    %v657 = vpack.c.b16 %v647, %v646
    %v658 = vpack.c.b16 %v649, %v648
    %v659 = vpack.c.b16 %v651, %v650
    %668 = vmatprep.subr.bf16.mxu0 0
    %669 = vmatpush1.bf16.msra.mxu0 %v652
    %670 = vmatprep.subr.bf16.mxu0 0
    %671 = vmatpush1.bf16.msra.mxu0 %v653
    %672 = vmatprep.subr.bf16.mxu0 0
    %673 = vmatpush1.bf16.msra.mxu0 %v654
    %674 = vmatprep.subr.bf16.mxu0 0
    %675 = vmatpush1.bf16.msra.mxu0 %v655
    %676 = vmatprep.subr.bf16.mxu0 0
    %677 = vmatpush1.bf16.msra.mxu0 %v656
    %678 = vmatprep.subr.bf16.mxu0 0
    %679 = vmatpush1.bf16.msra.mxu0 %v657
    %680 = vmatprep.subr.bf16.mxu0 0
    %681 = vmatpush1.bf16.msra.mxu0 %v658
    %682 = vmatprep.subr.bf16.mxu0 0
    %683 = vmatpush1.bf16.msra.mxu0 %v659
    %684 = vmatprep.subr.bf16.mxu0 0
    %685 = vmatpush1.bf16.msra.mxu0 0
    %686 = vmatprep.subr.bf16.mxu0 0
    %687 = vmatpush1.bf16.msra.mxu0 0
    %688 = vmatprep.subr.bf16.mxu0 0
    %689 = vmatpush1.bf16.msra.mxu0 0
    %690 = vmatprep.subr.bf16.mxu0 0
    %691 = vmatpush1.bf16.msra.mxu0 0
    %692 = vmatprep.subr.bf16.mxu0 0
    %693 = vmatpush1.bf16.msra.mxu0 0
    %694 = vmatprep.subr.bf16.mxu0 0
    %695 = vmatpush1.bf16.msra.mxu0 0
    %696 = vmatprep.subr.bf16.mxu0 0
    %697 = vmatpush1.bf16.msra.mxu0 0
    %698 = vmatprep.subr.bf16.mxu0 0
    %699 = vmatpush1.bf16.msra.mxu0 0
    %700 = vmatprep.mubr.bf16.mxu0 0
    %701 = vmatmul.mubr.bf16.gmra.mrb[0].mxu0 %v613
    %v702 = vpop.f32.mrb[0].mxu0
    %v703 = vadd.f32 %v618, %v702
    %v704 = vpop.f32.mrb[0].mxu0
    %v705 = vpop.f32.mrb[0].mxu0
    %v706 = vpop.f32.mrb[0].mxu0
    %707 = vdwg.mxu0
    %v708 = vmax.f32 %v703, 0.0
    %v709 = vld [vmem:[#allocation13] sm:$0xf]
    %v710 = vld [vmem:[#allocation13 + $0x4] sm:$0xf]
    %v711 = vld [vmem:[#allocation13 + $0x8] sm:$0xf]
    %v712 = vld [vmem:[#allocation13 + $0xc] sm:$0xf]
    %v713 = vld [vmem:[#allocation13 + $0x10] sm:$0xf]
    %v714 = vld [vmem:[#allocation13 + $0x14] sm:$0xf]
    %v715 = vld [vmem:[#allocation13 + $0x18] sm:$0xf]
    %v716 = vld [vmem:[#allocation13 + $0x1c] sm:$0xf]
    %v717 = vld [vmem:[#allocation13 + $0x20] sm:$0xf]
    %v718 = vld [vmem:[#allocation13 + $0x24] sm:$0xf]
    %v719 = vld [vmem:[#allocation13 + $0x28] sm:$0xf]
    %v720 = vld [vmem:[#allocation13 + $0x2c] sm:$0xf]
    %v721 = vld [vmem:[#allocation13 + $0x30] sm:$0xf]
    %v722 = vld [vmem:[#allocation13 + $0x34] sm:$0xf]
    %v723 = vld [vmem:[#allocation13 + $0x38] sm:$0xf]
    %v724 = vld [vmem:[#allocation13 + $0x3c] sm:$0xf]
    %v725 = vld [vmem:[%s12] sm:$0x1]
    %v726 = vpack.c.bf16 %v708, %v708
    %v728 = vlaneseq
    %v729 = vshrl.u32 %v728, 7
    %v730 = vsub.s32 0, %v729
    %v731 = vrot.slane %v725, %v730
    %v749 = vunpack.c.l.b16 %v709
    %v750 = vunpack.c.l.b16 %v710
    %v751 = vunpack.c.l.b16 %v711
    %v752 = vunpack.c.l.b16 %v712
    %v753 = vunpack.c.l.b16 %v713
    %v754 = vunpack.c.l.b16 %v714
    %v755 = vunpack.c.l.b16 %v715
    %v756 = vunpack.c.l.b16 %v716
    %v757 = vunpack.c.l.b16 %v717
    %v758 = vunpack.c.l.b16 %v718
    %v759 = vunpack.c.l.b16 %v719
    %v760 = vunpack.c.l.b16 %v720
    %v761 = vunpack.c.l.b16 %v721
    %v762 = vunpack.c.l.b16 %v722
    %v763 = vunpack.c.l.b16 %v723
    %v764 = vunpack.c.l.b16 %v724
    %v765 = vpack.c.b16 %v750, %v749
    %v766 = vpack.c.b16 %v752, %v751
    %v767 = vpack.c.b16 %v754, %v753
    %v768 = vpack.c.b16 %v756, %v755
    %v769 = vpack.c.b16 %v758, %v757
    %v770 = vpack.c.b16 %v760, %v759
    %v771 = vpack.c.b16 %v762, %v761
    %v772 = vpack.c.b16 %v764, %v763
    %781 = vmatprep.subr.bf16.mxu0 0
    %782 = vmatpush1.bf16.msra.mxu0 %v765
    %783 = vmatprep.subr.bf16.mxu0 0
    %784 = vmatpush1.bf16.msra.mxu0 %v766
    %785 = vmatprep.subr.bf16.mxu0 0
    %786 = vmatpush1.bf16.msra.mxu0 %v767
    %787 = vmatprep.subr.bf16.mxu0 0
    %788 = vmatpush1.bf16.msra.mxu0 %v768
    %789 = vmatprep.subr.bf16.mxu0 0
    %790 = vmatpush1.bf16.msra.mxu0 %v769
    %791 = vmatprep.subr.bf16.mxu0 0
    %792 = vmatpush1.bf16.msra.mxu0 %v770
    %793 = vmatprep.subr.bf16.mxu0 0
    %794 = vmatpush1.bf16.msra.mxu0 %v771
    %795 = vmatprep.subr.bf16.mxu0 0
    %796 = vmatpush1.bf16.msra.mxu0 %v772
    %797 = vmatprep.subr.bf16.mxu0 0
    %798 = vmatpush1.bf16.msra.mxu0 0
    %799 = vmatprep.subr.bf16.mxu0 0
    %800 = vmatpush1.bf16.msra.mxu0 0
    %801 = vmatprep.subr.bf16.mxu0 0
    %802 = vmatpush1.bf16.msra.mxu0 0
    %803 = vmatprep.subr.bf16.mxu0 0
    %804 = vmatpush1.bf16.msra.mxu0 0
    %805 = vmatprep.subr.bf16.mxu0 0
    %806 = vmatpush1.bf16.msra.mxu0 0
    %807 = vmatprep.subr.bf16.mxu0 0
    %808 = vmatpush1.bf16.msra.mxu0 0
    %809 = vmatprep.subr.bf16.mxu0 0
    %810 = vmatpush1.bf16.msra.mxu0 0
    %811 = vmatprep.subr.bf16.mxu0 0
    %812 = vmatpush1.bf16.msra.mxu0 0
    %813 = vmatprep.mubr.bf16.mxu0 0
    %814 = vmatmul.mubr.bf16.gmra.mrb[0].mxu0 %v726
    %v815 = vpop.f32.mrb[0].mxu0
    %v816 = vadd.f32 %v731, %v815
    %v817 = vpop.f32.mrb[0].mxu0
    %v818 = vpop.f32.mrb[0].mxu0
    %v819 = vpop.f32.mrb[0].mxu0
    %820 = vdwg.mxu0
    %v821 = vand.u32 2147483647, %v816
    %v822 = vsub.f32 0.0, %v821
    %v823 = vmul.f32 %v822, 1.442695
    %v824 = vpow.pop %v823
    %v825 = vadd.f32 %v824, 1.0
    %v826 = vrcp.pop %v825
    %vm827 = vcmp.ge.f32.partialorder %v816, 0.0
    %v828 = vmul.f32 %v824, %v826
    %v829 = vsel %vm827, %v826, %v828
    %830 = vst [vmem:[#allocation14] sm:$0xff] %v829
    // Predicated region
    $region82: #{tpu_custom_call.1} parent=1 // pred_check
      _
    $region83: #{tpu_custom_call.1} parent=1 // pred_check_branch
      %832 = sbr.rel (0) target = $region85
    $region84: #{tpu_custom_call.1} parent=1 // pred_region
      %s834 = ssub.s32 128, 128
      %835 = vsyncadd [#allocation4], %s834
      %s837 = sshll.u32 [#allocation14], 4
      %s838 = int_to_ptr.vmem [resolvable:$true] %s837
      %840 = dma.vmem_to_hbm [thread:$0]  %s838, 128, %s13, [#allocation4]
    $region85: #{tpu_custom_call.1} parent=1 // pred_fallthru
      _
    // Predicated region
    $region86: #{tpu_custom_call.1} parent=1 // pred_check
      _
    $region87: #{tpu_custom_call.1} parent=1 // pred_check_branch
      %842 = sbr.rel (0) target = $region89
    $region88: #{tpu_custom_call.1} parent=1 // pred_region
      %s844 = ssub.s32 128, 128
      %845 = vsyncadd [#allocation16], %s844
      %s847 = sshll.u32 [#allocation15], 4
      %s848 = int_to_ptr.vmem [resolvable:$true] %s847
      %850 = dma.vmem_to_hbm [thread:$0]  %s848, 128, %s14, [#allocation16]
    $region89: #{tpu_custom_call.1} parent=1 // pred_fallthru
      _
    // Predicated region
    $region90: #{tpu_custom_call.1} parent=1 // pred_check
      _
    $region91: #{tpu_custom_call.1} parent=1 // pred_check_branch
      %852 = sbr.rel (0) target = $region93
    $region92: #{tpu_custom_call.1} parent=1 // pred_region
      %853 = dma.done [#allocation4], 128
    $region93: #{tpu_custom_call.1} parent=1 // pred_fallthru
      _
    // Predicated region
    $region94: #{tpu_custom_call.1} parent=1 // pred_check
      _
    $region95: #{tpu_custom_call.1} parent=1 // pred_check_branch
      %855 = sbr.rel (0) target = $region97
    $region96: #{tpu_custom_call.1} parent=1 // pred_region
      %856 = dma.done [#allocation16], 128
    $region97: #{tpu_custom_call.1} parent=1 // pred_fallthru
      _
    %857 = vsyncpa [#allocation3], 1
    %858 = vsyncpa [#allocation6], 1
    %859 = vsyncpa [#allocation9], 1
    %860 = vsyncpa [#allocation12], 1
    %861 = vsyncpa [#allocation4], 1
    %862 = vsyncpa [#allocation16], 1

// kernel: tpu_custom_call.1
$region0: #{tpu_custom_call.1}
  #allocation0 [shape = 'u32[]', space=smem, size = 0x4, offset = 0x4, fixed_abs, tag = 'smem constant byte address 0x4 - core index']
  #allocation1 [shape = 'u32[144,128]{1,0:T(1,128)}', space=vmem, size = 0x12000, scoped, tag = 'internal scratch']
  %s0 = inlined_call_operand.hbm [shape: f32[8,128], index: 0, kind: input, shape index: {}]
  %s1 = inlined_call_operand.hbm [shape: bf16[128,128], index: 1, kind: input, shape index: {}]
  %s2 = inlined_call_operand.vmem [shape: f32[1,128], index: 2, kind: input, shape index: {}]
  %s3 = inlined_call_operand.hbm [shape: bf16[128,128], index: 3, kind: input, shape index: {}]
  %s4 = inlined_call_operand.vmem [shape: f32[1,128], index: 4, kind: input, shape index: {}]
  %s5 = inlined_call_operand.hbm [shape: bf16[128,128], index: 5, kind: input, shape index: {}]
  %s6 = inlined_call_operand.vmem [shape: f32[1,128], index: 6, kind: input, shape index: {}]
  %s7 = inlined_call_operand.hbm [shape: bf16[128,128], index: 7, kind: input, shape index: {}]
  %s8 = inlined_call_operand.vmem [shape: f32[1,128], index: 8, kind: input, shape index: {}]
  %s9 = inlined_call_operand.hbm [shape: bf16[128,128], index: 9, kind: input, shape index: {}]
  %s10 = inlined_call_operand.vmem [shape: f32[1,128], index: 10, kind: input, shape index: {}]
  %s11 = inlined_call_operand.hbm [shape: bf16[128,128], index: 11, kind: input, shape index: {}]
  %s12 = inlined_call_operand.vmem [shape: f32[1,128], index: 12, kind: input, shape index: {}]
  %s13 = inlined_call_operand.hbm [shape: f32[8,128], index: 13, kind: output, shape index: {0}]
  %s14 = inlined_call_operand.hbm [shape: f32[8,128], index: 14, kind: output, shape index: {1}]
  %15 = xla_tuple %s13, %s14
  %s16 = sld [smem:[#allocation0]]
  $region98: #{tpu_custom_call.1} parent=0
    _
  %s18 = ssub.s32 1, %s16
  %s19 = scalar_select 0, %s18, %s16
  $region1: #{tpu_custom_call.1} parent=0
    #allocation2 [shape = 'u8[4096]{0}', space=vmem, size = 0x1000, scoped, tag = 'input window, operand 0, single buffered']
    #allocation3 [shape = 's32[1]{0}', space=sflag, size = 0x4, scoped, tag = 'scoped memory for tpu_custom_call.1']
    #allocation4 [shape = 's32[1]{0}', space=sflag, size = 0x4, scoped, tag = 'scoped memory for tpu_custom_call.1']
    #allocation5 [shape = 'u8[32768]{0}', space=vmem, size = 0x8000, scoped, tag = 'input window, operand 1, single buffered']
    #allocation6 [shape = 's32[1]{0}', space=sflag, size = 0x4, scoped, tag = 'scoped memory for tpu_custom_call.1']
    #allocation7 [shape = 'u8[32768]{0}', space=vmem, size = 0x8000, scoped, tag = 'input window, operand 3, single buffered']
    #allocation8 [shape = 'u8[32768]{0}', space=vmem, size = 0x8000, scoped, tag = 'input window, operand 5, single buffered']
    #allocation9 [shape = 's32[1]{0}', space=sflag, size = 0x4, scoped, tag = 'scoped memory for tpu_custom_call.1']
    #allocation10 [shape = 'u8[32768]{0}', space=vmem, size = 0x8000, scoped, tag = 'input window, operand 7, single buffered']
    #allocation11 [shape = 'u8[32768]{0}', space=vmem, size = 0x8000, scoped, tag = 'input window, operand 9, single buffered']
    #allocation12 [shape = 's32[1]{0}', space=sflag, size = 0x4, scoped, tag = 'scoped memory for tpu_custom_call.1']
    #allocation13 [shape = 'u8[32768]{0}', space=vmem, size = 0x8000, scoped, tag = 'input window, operand 11, single buffered']
    #allocation14 [shape = 'u8[4096]{0}', space=vmem, size = 0x1000, scoped, tag = 'output window, operand 0, single buffered']
    #allocation15 [shape = 'u8[4096]{0}', space=vmem, size = 0x1000, scoped, tag = 'output window, operand 1, single buffered']
    #allocation16 [shape = 's32[1]{0}', space=sflag, size = 0x4, scoped, tag = 'scoped memory for tpu_custom_call.1']
    %20 = vsyncpa [#allocation3], 0
    %21 = vsyncpa [#allocation6], 0
    %22 = vsyncpa [#allocation9], 0
    %23 = vsyncpa [#allocation12], 0
    %24 = vsyncpa [#allocation4], 0
    %25 = vsyncpa [#allocation16], 0
    // Predicated region
    $region2: #{tpu_custom_call.1} parent=1 // pred_check
      _
    $region3: #{tpu_custom_call.1} parent=1 // pred_check_branch
      %27 = sbr.rel (0) target = $region5
    $region4: #{tpu_custom_call.1} parent=1 // pred_region
      %s29 = ssub.s32 128, 128
      %30 = vsyncadd [#allocation3], %s29
      %s32 = sshll.u32 [#allocation2], 4
      %s33 = int_to_ptr.vmem [resolvable:$true] %s32
      %35 = dma.hbm_to_vmem [thread:$0]  %s0, 128, %s33, [#allocation3]
    $region5: #{tpu_custom_call.1} parent=1 // pred_fallthru
      _
    // Predicated region
    $region6: #{tpu_custom_call.1} parent=1 // pred_check
      _
    $region7: #{tpu_custom_call.1} parent=1 // pred_check_branch
      %37 = sbr.rel (0) target = $region9
    $region8: #{tpu_custom_call.1} parent=1 // pred_region
      %s39 = ssub.s32 1024, 1024
      %40 = vsyncadd [#allocation6], %s39
      %s41 = sshll.u32 [#allocation5], 4
      %s42 = int_to_ptr.vmem [resolvable:$true] %s41
      %47 = dma.hbm_to_vmem [thread:$0]  %s1, 1024, %s42, [#allocation6], 64, 64, 4
    $region9: #{tpu_custom_call.1} parent=1 // pred_fallthru
      _
    // Predicated region
    $region10: #{tpu_custom_call.1} parent=1 // pred_check
      _
    $region11: #{tpu_custom_call.1} parent=1 // pred_check_branch
      %49 = sbr.rel (0) target = $region13
    $region12: #{tpu_custom_call.1} parent=1 // pred_region
      _
    $region13: #{tpu_custom_call.1} parent=1 // pred_fallthru
      _
    // Predicated region
    $region14: #{tpu_custom_call.1} parent=1 // pred_check
      _
    $region15: #{tpu_custom_call.1} parent=1 // pred_check_branch
      %51 = sbr.rel (0) target = $region17
    $region16: #{tpu_custom_call.1} parent=1 // pred_region
      %s53 = ssub.s32 1024, 1024
      %54 = vsyncadd [#allocation6], %s53
      %s55 = sshll.u32 [#allocation7], 4
      %s56 = int_to_ptr.vmem [resolvable:$true] %s55
      %61 = dma.hbm_to_vmem [thread:$0]  %s3, 1024, %s56, [#allocation6], 64, 64, 4
    $region17: #{tpu_custom_call.1} parent=1 // pred_fallthru
      _
    // Predicated region
    $region18: #{tpu_custom_call.1} parent=1 // pred_check
      _
    $region19: #{tpu_custom_call.1} parent=1 // pred_check_branch
      %63 = sbr.rel (0) target = $region21
    $region20: #{tpu_custom_call.1} parent=1 // pred_region
      _
    $region21: #{tpu_custom_call.1} parent=1 // pred_fallthru
      _
    // Predicated region
    $region22: #{tpu_custom_call.1} parent=1 // pred_check
      _
    $region23: #{tpu_custom_call.1} parent=1 // pred_check_branch
      %65 = sbr.rel (0) target = $region25
    $region24: #{tpu_custom_call.1} parent=1 // pred_region
      %s67 = ssub.s32 1024, 1024
      %68 = vsyncadd [#allocation9], %s67
      %s69 = sshll.u32 [#allocation8], 4
      %s70 = int_to_ptr.vmem [resolvable:$true] %s69
      %75 = dma.hbm_to_vmem [thread:$0]  %s5, 1024, %s70, [#allocation9], 64, 64, 4
    $region25: #{tpu_custom_call.1} parent=1 // pred_fallthru
      _
    // Predicated region
    $region26: #{tpu_custom_call.1} parent=1 // pred_check
      _
    $region27: #{tpu_custom_call.1} parent=1 // pred_check_branch
      %77 = sbr.rel (0) target = $region29
    $region28: #{tpu_custom_call.1} parent=1 // pred_region
      _
    $region29: #{tpu_custom_call.1} parent=1 // pred_fallthru
      _
    // Predicated region
    $region30: #{tpu_custom_call.1} parent=1 // pred_check
      _
    $region31: #{tpu_custom_call.1} parent=1 // pred_check_branch
      %79 = sbr.rel (0) target = $region33
    $region32: #{tpu_custom_call.1} parent=1 // pred_region
      %s81 = ssub.s32 1024, 1024
      %82 = vsyncadd [#allocation9], %s81
      %s83 = sshll.u32 [#allocation10], 4
      %s84 = int_to_ptr.vmem [resolvable:$true] %s83
      %89 = dma.hbm_to_vmem [thread:$0]  %s7, 1024, %s84, [#allocation9], 64, 64, 4
    $region33: #{tpu_custom_call.1} parent=1 // pred_fallthru
      _
    // Predicated region
    $region34: #{tpu_custom_call.1} parent=1 // pred_check
      _
    $region35: #{tpu_custom_call.1} parent=1 // pred_check_branch
      %91 = sbr.rel (0) target = $region37
    $region36: #{tpu_custom_call.1} parent=1 // pred_region
      _
    $region37: #{tpu_custom_call.1} parent=1 // pred_fallthru
      _
    // Predicated region
    $region38: #{tpu_custom_call.1} parent=1 // pred_check
      _
    $region39: #{tpu_custom_call.1} parent=1 // pred_check_branch
      %93 = sbr.rel (0) target = $region41
    $region40: #{tpu_custom_call.1} parent=1 // pred_region
      %s95 = ssub.s32 1024, 1024
      %96 = vsyncadd [#allocation12], %s95
      %s97 = sshll.u32 [#allocation11], 4
      %s98 = int_to_ptr.vmem [resolvable:$true] %s97
      %103 = dma.hbm_to_vmem [thread:$0]  %s9, 1024, %s98, [#allocation12], 64, 64, 4
    $region41: #{tpu_custom_call.1} parent=1 // pred_fallthru
      _
    // Predicated region
    $region42: #{tpu_custom_call.1} parent=1 // pred_check
      _
    $region43: #{tpu_custom_call.1} parent=1 // pred_check_branch
      %105 = sbr.rel (0) target = $region45
    $region44: #{tpu_custom_call.1} parent=1 // pred_region
      _
    $region45: #{tpu_custom_call.1} parent=1 // pred_fallthru
      _
    // Predicated region
    $region46: #{tpu_custom_call.1} parent=1 // pred_check
      _
    $region47: #{tpu_custom_call.1} parent=1 // pred_check_branch
      %107 = sbr.rel (0) target = $region49
    $region48: #{tpu_custom_call.1} parent=1 // pred_region
      %s109 = ssub.s32 1024, 1024
      %110 = vsyncadd [#allocation12], %s109
      %s111 = sshll.u32 [#allocation13], 4
      %s112 = int_to_ptr.vmem [resolvable:$true] %s111
      %117 = dma.hbm_to_vmem [thread:$0]  %s11, 1024, %s112, [#allocation12], 64, 64, 4
    $region49: #{tpu_custom_call.1} parent=1 // pred_fallthru
      _
    // Predicated region
    $region50: #{tpu_custom_call.1} parent=1 // pred_check
      _
    $region51: #{tpu_custom_call.1} parent=1 // pred_check_branch
      %119 = sbr.rel (0) target = $region53
    $region52: #{tpu_custom_call.1} parent=1 // pred_region
      _
    $region53: #{tpu_custom_call.1} parent=1 // pred_fallthru
      _
    // Predicated region
    $region54: #{tpu_custom_call.1} parent=1 // pred_check
      _
    $region55: #{tpu_custom_call.1} parent=1 // pred_check_branch
      %121 = sbr.rel (0) target = $region57
    $region56: #{tpu_custom_call.1} parent=1 // pred_region
      %122 = dma.done [#allocation3], 128
    $region57: #{tpu_custom_call.1} parent=1 // pred_fallthru
      _
    // Predicated region
    $region58: #{tpu_custom_call.1} parent=1 // pred_check
      _
    $region59: #{tpu_custom_call.1} parent=1 // pred_check_branch
      %124 = sbr.rel (0) target = $region61
    $region60: #{tpu_custom_call.1} parent=1 // pred_region
      %125 = dma.done [#allocation6], 1024
    $region61: #{tpu_custom_call.1} parent=1 // pred_fallthru
      _
    // Predicated region
    $region62: #{tpu_custom_call.1} parent=1 // pred_check
      _
    $region63: #{tpu_custom_call.1} parent=1 // pred_check_branch
      %127 = sbr.rel (0) target = $region65
    $region64: #{tpu_custom_call.1} parent=1 // pred_region
      %128 = dma.done [#allocation6], 1024
    $region65: #{tpu_custom_call.1} parent=1 // pred_fallthru
      _
    // Predicated region
    $region66: #{tpu_custom_call.1} parent=1 // pred_check
      _
    $region67: #{tpu_custom_call.1} parent=1 // pred_check_branch
      %130 = sbr.rel (0) target = $region69
    $region68: #{tpu_custom_call.1} parent=1 // pred_region
      %131 = dma.done [#allocation9], 1024
    $region69: #{tpu_custom_call.1} parent=1 // pred_fallthru
      _
    // Predicated region
    $region70: #{tpu_custom_call.1} parent=1 // pred_check
      _
    $region71: #{tpu_custom_call.1} parent=1 // pred_check_branch
      %133 = sbr.rel (0) target = $region73
    $region72: #{tpu_custom_call.1} parent=1 // pred_region
      %134 = dma.done [#allocation9], 1024
    $region73: #{tpu_custom_call.1} parent=1 // pred_fallthru
      _
    // Predicated region
    $region74: #{tpu_custom_call.1} parent=1 // pred_check
      _
    $region75: #{tpu_custom_call.1} parent=1 // pred_check_branch
      %136 = sbr.rel (0) target = $region77
    $region76: #{tpu_custom_call.1} parent=1 // pred_region
      %137 = dma.done [#allocation12], 1024
    $region77: #{tpu_custom_call.1} parent=1 // pred_fallthru
      _
    // Predicated region
    $region78: #{tpu_custom_call.1} parent=1 // pred_check
      _
    $region79: #{tpu_custom_call.1} parent=1 // pred_check_branch
      %139 = sbr.rel (0) target = $region81
    $region80: #{tpu_custom_call.1} parent=1 // pred_region
      %140 = dma.done [#allocation12], 1024
    $region81: #{tpu_custom_call.1} parent=1 // pred_fallthru
      _
    %v142 = vld [vmem:[#allocation2] sm:$0xff]
    %v143 = vld [vmem:[#allocation5] sm:$0xf]
    %v144 = vld [vmem:[#allocation5 + $0x4] sm:$0xf]
    %v145 = vld [vmem:[#allocation5 + $0x8] sm:$0xf]
    %v146 = vld [vmem:[#allocation5 + $0xc] sm:$0xf]
    %v147 = vld [vmem:[#allocation5 + $0x10] sm:$0xf]
    %v148 = vld [vmem:[#allocation5 + $0x14] sm:$0xf]
    %v149 = vld [vmem:[#allocation5 + $0x18] sm:$0xf]
    %v150 = vld [vmem:[#allocation5 + $0x1c] sm:$0xf]
    %v151 = vld [vmem:[#allocation5 + $0x20] sm:$0xf]
    %v152 = vld [vmem:[#allocation5 + $0x24] sm:$0xf]
    %v153 = vld [vmem:[#allocation5 + $0x28] sm:$0xf]
    %v154 = vld [vmem:[#allocation5 + $0x2c] sm:$0xf]
    %v155 = vld [vmem:[#allocation5 + $0x30] sm:$0xf]
    %v156 = vld [vmem:[#allocation5 + $0x34] sm:$0xf]
    %v157 = vld [vmem:[#allocation5 + $0x38] sm:$0xf]
    %v158 = vld [vmem:[#allocation5 + $0x3c] sm:$0xf]
    %v159 = vld [vmem:[%s2] sm:$0x1]
    %v160 = vpack.c.bf16 %v142, %v142
    %v162 = vlaneseq
    %v163 = vshrl.u32 %v162, 7
    %v164 = vsub.s32 0, %v163
    %v165 = vrot.slane %v159, %v164
    %v183 = vunpack.c.l.b16 %v143
    %v184 = vunpack.c.l.b16 %v144
    %v185 = vunpack.c.l.b16 %v145
    %v186 = vunpack.c.l.b16 %v146
    %v187 = vunpack.c.l.b16 %v147
    %v188 = vunpack.c.l.b16 %v148
    %v189 = vunpack.c.l.b16 %v149
    %v190 = vunpack.c.l.b16 %v150
    %v191 = vunpack.c.l.b16 %v151
    %v192 = vunpack.c.l.b16 %v152
    %v193 = vunpack.c.l.b16 %v153
    %v194 = vunpack.c.l.b16 %v154
    %v195 = vunpack.c.l.b16 %v155
    %v196 = vunpack.c.l.b16 %v156
    %v197 = vunpack.c.l.b16 %v157
    %v198 = vunpack.c.l.b16 %v158
    %v199 = vpack.c.b16 %v184, %v183
    %v200 = vpack.c.b16 %v186, %v185
    %v201 = vpack.c.b16 %v188, %v187
    %v202 = vpack.c.b16 %v190, %v189
    %v203 = vpack.c.b16 %v192, %v191
    %v204 = vpack.c.b16 %v194, %v193
    %v205 = vpack.c.b16 %v196, %v195
    %v206 = vpack.c.b16 %v198, %v197
    %215 = vmatprep.subr.bf16.mxu0 0
    %216 = vmatpush1.bf16.msra.mxu0 %v199
    %217 = vmatprep.subr.bf16.mxu0 0
    %218 = vmatpush1.bf16.msra.mxu0 %v200
    %219 = vmatprep.subr.bf16.mxu0 0
    %220 = vmatpush1.bf16.msra.mxu0 %v201
    %221 = vmatprep.subr.bf16.mxu0 0
    %222 = vmatpush1.bf16.msra.mxu0 %v202
    %223 = vmatprep.subr.bf16.mxu0 0
    %224 = vmatpush1.bf16.msra.mxu0 %v203
    %225 = vmatprep.subr.bf16.mxu0 0
    %226 = vmatpush1.bf16.msra.mxu0 %v204
    %227 = vmatprep.subr.bf16.mxu0 0
    %228 = vmatpush1.bf16.msra.mxu0 %v205
    %229 = vmatprep.subr.bf16.mxu0 0
    %230 = vmatpush1.bf16.msra.mxu0 %v206
    %231 = vmatprep.subr.bf16.mxu0 0
    %232 = vmatpush1.bf16.msra.mxu0 0
    %233 = vmatprep.subr.bf16.mxu0 0
    %234 = vmatpush1.bf16.msra.mxu0 0
    %235 = vmatprep.subr.bf16.mxu0 0
    %236 = vmatpush1.bf16.msra.mxu0 0
    %237 = vmatprep.subr.bf16.mxu0 0
    %238 = vmatpush1.bf16.msra.mxu0 0
    %239 = vmatprep.subr.bf16.mxu0 0
    %240 = vmatpush1.bf16.msra.mxu0 0
    %241 = vmatprep.subr.bf16.mxu0 0
    %242 = vmatpush1.bf16.msra.mxu0 0
    %243 = vmatprep.subr.bf16.mxu0 0
    %244 = vmatpush1.bf16.msra.mxu0 0
    %245 = vmatprep.subr.bf16.mxu0 0
    %246 = vmatpush1.bf16.msra.mxu0 0
    %247 = vmatprep.mubr.bf16.mxu0 0
    %248 = vmatmul.mubr.bf16.gmra.mrb[0].mxu0 %v160
    %v249 = vpop.f32.mrb[0].mxu0
    %v250 = vadd.f32 %v165, %v249
    %v251 = vpop.f32.mrb[0].mxu0
    %v252 = vpop.f32.mrb[0].mxu0
    %v253 = vpop.f32.mrb[0].mxu0
    %254 = vdwg.mxu0
    %v255 = vmax.f32 %v250, 0.0
    %v256 = vld [vmem:[#allocation7] sm:$0xf]
    %v257 = vld [vmem:[#allocation7 + $0x4] sm:$0xf]
    %v258 = vld [vmem:[#allocation7 + $0x8] sm:$0xf]
    %v259 = vld [vmem:[#allocation7 + $0xc] sm:$0xf]
    %v260 = vld [vmem:[#allocation7 + $0x10] sm:$0xf]
    %v261 = vld [vmem:[#allocation7 + $0x14] sm:$0xf]
    %v262 = vld [vmem:[#allocation7 + $0x18] sm:$0xf]
    %v263 = vld [vmem:[#allocation7 + $0x1c] sm:$0xf]
    %v264 = vld [vmem:[#allocation7 + $0x20] sm:$0xf]
    %v265 = vld [vmem:[#allocation7 + $0x24] sm:$0xf]
    %v266 = vld [vmem:[#allocation7 + $0x28] sm:$0xf]
    %v267 = vld [vmem:[#allocation7 + $0x2c] sm:$0xf]
    %v268 = vld [vmem:[#allocation7 + $0x30] sm:$0xf]
    %v269 = vld [vmem:[#allocation7 + $0x34] sm:$0xf]
    %v270 = vld [vmem:[#allocation7 + $0x38] sm:$0xf]
    %v271 = vld [vmem:[#allocation7 + $0x3c] sm:$0xf]
    %v272 = vld [vmem:[%s4] sm:$0x1]
    %v273 = vpack.c.bf16 %v255, %v255
    %v275 = vlaneseq
    %v276 = vshrl.u32 %v275, 7
    %v277 = vsub.s32 0, %v276
    %v278 = vrot.slane %v272, %v277
    %v296 = vunpack.c.l.b16 %v256
    %v297 = vunpack.c.l.b16 %v257
    %v298 = vunpack.c.l.b16 %v258
    %v299 = vunpack.c.l.b16 %v259
    %v300 = vunpack.c.l.b16 %v260
    %v301 = vunpack.c.l.b16 %v261
    %v302 = vunpack.c.l.b16 %v262
    %v303 = vunpack.c.l.b16 %v263
    %v304 = vunpack.c.l.b16 %v264
    %v305 = vunpack.c.l.b16 %v265
    %v306 = vunpack.c.l.b16 %v266
    %v307 = vunpack.c.l.b16 %v267
    %v308 = vunpack.c.l.b16 %v268
    %v309 = vunpack.c.l.b16 %v269
    %v310 = vunpack.c.l.b16 %v270
    %v311 = vunpack.c.l.b16 %v271
    %v312 = vpack.c.b16 %v297, %v296
    %v313 = vpack.c.b16 %v299, %v298
    %v314 = vpack.c.b16 %v301, %v300
    %v315 = vpack.c.b16 %v303, %v302
    %v316 = vpack.c.b16 %v305, %v304
    %v317 = vpack.c.b16 %v307, %v306
    %v318 = vpack.c.b16 %v309, %v308
    %v319 = vpack.c.b16 %v311, %v310
    %328 = vmatprep.subr.bf16.mxu0 0
    %329 = vmatpush1.bf16.msra.mxu0 %v312
    %330 = vmatprep.subr.bf16.mxu0 0
    %331 = vmatpush1.bf16.msra.mxu0 %v313
    %332 = vmatprep.subr.bf16.mxu0 0
    %333 = vmatpush1.bf16.msra.mxu0 %v314
    %334 = vmatprep.subr.bf16.mxu0 0
    %335 = vmatpush1.bf16.msra.mxu0 %v315
    %336 = vmatprep.subr.bf16.mxu0 0
    %337 = vmatpush1.bf16.msra.mxu0 %v316
    %338 = vmatprep.subr.bf16.mxu0 0
    %339 = vmatpush1.bf16.msra.mxu0 %v317
    %340 = vmatprep.subr.bf16.mxu0 0
    %341 = vmatpush1.bf16.msra.mxu0 %v318
    %342 = vmatprep.subr.bf16.mxu0 0
    %343 = vmatpush1.bf16.msra.mxu0 %v319
    %344 = vmatprep.subr.bf16.mxu0 0
    %345 = vmatpush1.bf16.msra.mxu0 0
    %346 = vmatprep.subr.bf16.mxu0 0
    %347 = vmatpush1.bf16.msra.mxu0 0
    %348 = vmatprep.subr.bf16.mxu0 0
    %349 = vmatpush1.bf16.msra.mxu0 0
    %350 = vmatprep.subr.bf16.mxu0 0
    %351 = vmatpush1.bf16.msra.mxu0 0
    %352 = vmatprep.subr.bf16.mxu0 0
    %353 = vmatpush1.bf16.msra.mxu0 0
    %354 = vmatprep.subr.bf16.mxu0 0
    %355 = vmatpush1.bf16.msra.mxu0 0
    %356 = vmatprep.subr.bf16.mxu0 0
    %357 = vmatpush1.bf16.msra.mxu0 0
    %358 = vmatprep.subr.bf16.mxu0 0
    %359 = vmatpush1.bf16.msra.mxu0 0
    %360 = vmatprep.mubr.bf16.mxu0 0
    %361 = vmatmul.mubr.bf16.gmra.mrb[0].mxu0 %v273
    %v362 = vpop.f32.mrb[0].mxu0
    %v363 = vadd.f32 %v278, %v362
    %v364 = vpop.f32.mrb[0].mxu0
    %v365 = vpop.f32.mrb[0].mxu0
    %v366 = vpop.f32.mrb[0].mxu0
    %367 = vdwg.mxu0
    %v368 = vmax.f32 %v363, 0.0
    %v369 = vld [vmem:[#allocation8] sm:$0xf]
    %v370 = vld [vmem:[#allocation8 + $0x4] sm:$0xf]
    %v371 = vld [vmem:[#allocation8 + $0x8] sm:$0xf]
    %v372 = vld [vmem:[#allocation8 + $0xc] sm:$0xf]
    %v373 = vld [vmem:[#allocation8 + $0x10] sm:$0xf]
    %v374 = vld [vmem:[#allocation8 + $0x14] sm:$0xf]
    %v375 = vld [vmem:[#allocation8 + $0x18] sm:$0xf]
    %v376 = vld [vmem:[#allocation8 + $0x1c] sm:$0xf]
    %v377 = vld [vmem:[#allocation8 + $0x20] sm:$0xf]
    %v378 = vld [vmem:[#allocation8 + $0x24] sm:$0xf]
    %v379 = vld [vmem:[#allocation8 + $0x28] sm:$0xf]
    %v380 = vld [vmem:[#allocation8 + $0x2c] sm:$0xf]
    %v381 = vld [vmem:[#allocation8 + $0x30] sm:$0xf]
    %v382 = vld [vmem:[#allocation8 + $0x34] sm:$0xf]
    %v383 = vld [vmem:[#allocation8 + $0x38] sm:$0xf]
    %v384 = vld [vmem:[#allocation8 + $0x3c] sm:$0xf]
    %v385 = vld [vmem:[%s6] sm:$0x1]
    %v386 = vpack.c.bf16 %v368, %v368
    %v388 = vlaneseq
    %v389 = vshrl.u32 %v388, 7
    %v390 = vsub.s32 0, %v389
    %v391 = vrot.slane %v385, %v390
    %v409 = vunpack.c.l.b16 %v369
    %v410 = vunpack.c.l.b16 %v370
    %v411 = vunpack.c.l.b16 %v371
    %v412 = vunpack.c.l.b16 %v372
    %v413 = vunpack.c.l.b16 %v373
    %v414 = vunpack.c.l.b16 %v374
    %v415 = vunpack.c.l.b16 %v375
    %v416 = vunpack.c.l.b16 %v376
    %v417 = vunpack.c.l.b16 %v377
    %v418 = vunpack.c.l.b16 %v378
    %v419 = vunpack.c.l.b16 %v379
    %v420 = vunpack.c.l.b16 %v380
    %v421 = vunpack.c.l.b16 %v381
    %v422 = vunpack.c.l.b16 %v382
    %v423 = vunpack.c.l.b16 %v383
    %v424 = vunpack.c.l.b16 %v384
    %v425 = vpack.c.b16 %v410, %v409
    %v426 = vpack.c.b16 %v412, %v411
    %v427 = vpack.c.b16 %v414, %v413
    %v428 = vpack.c.b16 %v416, %v415
    %v429 = vpack.c.b16 %v418, %v417
    %v430 = vpack.c.b16 %v420, %v419
    %v431 = vpack.c.b16 %v422, %v421
    %v432 = vpack.c.b16 %v424, %v423
    %441 = vmatprep.subr.bf16.mxu0 0
    %442 = vmatpush1.bf16.msra.mxu0 %v425
    %443 = vmatprep.subr.bf16.mxu0 0
    %444 = vmatpush1.bf16.msra.mxu0 %v426
    %445 = vmatprep.subr.bf16.mxu0 0
    %446 = vmatpush1.bf16.msra.mxu0 %v427
    %447 = vmatprep.subr.bf16.mxu0 0
    %448 = vmatpush1.bf16.msra.mxu0 %v428
    %449 = vmatprep.subr.bf16.mxu0 0
    %450 = vmatpush1.bf16.msra.mxu0 %v429
    %451 = vmatprep.subr.bf16.mxu0 0
    %452 = vmatpush1.bf16.msra.mxu0 %v430
    %453 = vmatprep.subr.bf16.mxu0 0
    %454 = vmatpush1.bf16.msra.mxu0 %v431
    %455 = vmatprep.subr.bf16.mxu0 0
    %456 = vmatpush1.bf16.msra.mxu0 %v432
    %457 = vmatprep.subr.bf16.mxu0 0
    %458 = vmatpush1.bf16.msra.mxu0 0
    %459 = vmatprep.subr.bf16.mxu0 0
    %460 = vmatpush1.bf16.msra.mxu0 0
    %461 = vmatprep.subr.bf16.mxu0 0
    %462 = vmatpush1.bf16.msra.mxu0 0
    %463 = vmatprep.subr.bf16.mxu0 0
    %464 = vmatpush1.bf16.msra.mxu0 0
    %465 = vmatprep.subr.bf16.mxu0 0
    %466 = vmatpush1.bf16.msra.mxu0 0
    %467 = vmatprep.subr.bf16.mxu0 0
    %468 = vmatpush1.bf16.msra.mxu0 0
    %469 = vmatprep.subr.bf16.mxu0 0
    %470 = vmatpush1.bf16.msra.mxu0 0
    %471 = vmatprep.subr.bf16.mxu0 0
    %472 = vmatpush1.bf16.msra.mxu0 0
    %473 = vmatprep.mubr.bf16.mxu0 0
    %474 = vmatmul.mubr.bf16.gmra.mrb[0].mxu0 %v386
    %v475 = vpop.f32.mrb[0].mxu0
    %v476 = vadd.f32 %v391, %v475
    %v477 = vpop.f32.mrb[0].mxu0
    %v478 = vpop.f32.mrb[0].mxu0
    %v479 = vpop.f32.mrb[0].mxu0
    %480 = vdwg.mxu0
    %v481 = vmax.f32 %v476, 0.0
    %482 = vst [vmem:[#allocation15] sm:$0xff] %v481
    %v483 = vld [vmem:[#allocation10] sm:$0xf]
    %v484 = vld [vmem:[#allocation10 + $0x4] sm:$0xf]
    %v485 = vld [vmem:[#allocation10 + $0x8] sm:$0xf]
    %v486 = vld [vmem:[#allocation10 + $0xc] sm:$0xf]
    %v487 = vld [vmem:[#allocation10 + $0x10] sm:$0xf]
    %v488 = vld [vmem:[#allocation10 + $0x14] sm:$0xf]
    %v489 = vld [vmem:[#allocation10 + $0x18] sm:$0xf]
    %v490 = vld [vmem:[#allocation10 + $0x1c] sm:$0xf]
    %v491 = vld [vmem:[#allocation10 + $0x20] sm:$0xf]
    %v492 = vld [vmem:[#allocation10 + $0x24] sm:$0xf]
    %v493 = vld [vmem:[#allocation10 + $0x28] sm:$0xf]
    %v494 = vld [vmem:[#allocation10 + $0x2c] sm:$0xf]
    %v495 = vld [vmem:[#allocation10 + $0x30] sm:$0xf]
    %v496 = vld [vmem:[#allocation10 + $0x34] sm:$0xf]
    %v497 = vld [vmem:[#allocation10 + $0x38] sm:$0xf]
    %v498 = vld [vmem:[#allocation10 + $0x3c] sm:$0xf]
    %v499 = vld [vmem:[%s8] sm:$0x1]
    %v500 = vpack.c.bf16 %v481, %v481
    %v502 = vlaneseq
    %v503 = vshrl.u32 %v502, 7
    %v504 = vsub.s32 0, %v503
    %v505 = vrot.slane %v499, %v504
    %v523 = vunpack.c.l.b16 %v483
    %v524 = vunpack.c.l.b16 %v484
    %v525 = vunpack.c.l.b16 %v485
    %v526 = vunpack.c.l.b16 %v486
    %v527 = vunpack.c.l.b16 %v487
    %v528 = vunpack.c.l.b16 %v488
    %v529 = vunpack.c.l.b16 %v489
    %v530 = vunpack.c.l.b16 %v490
    %v531 = vunpack.c.l.b16 %v491
    %v532 = vunpack.c.l.b16 %v492
    %v533 = vunpack.c.l.b16 %v493
    %v534 = vunpack.c.l.b16 %v494
    %v535 = vunpack.c.l.b16 %v495
    %v536 = vunpack.c.l.b16 %v496
    %v537 = vunpack.c.l.b16 %v497
    %v538 = vunpack.c.l.b16 %v498
    %v539 = vpack.c.b16 %v524, %v523
    %v540 = vpack.c.b16 %v526, %v525
    %v541 = vpack.c.b16 %v528, %v527
    %v542 = vpack.c.b16 %v530, %v529
    %v543 = vpack.c.b16 %v532, %v531
    %v544 = vpack.c.b16 %v534, %v533
    %v545 = vpack.c.b16 %v536, %v535
    %v546 = vpack.c.b16 %v538, %v537
    %555 = vmatprep.subr.bf16.mxu0 0
    %556 = vmatpush1.bf16.msra.mxu0 %v539
    %557 = vmatprep.subr.bf16.mxu0 0
    %558 = vmatpush1.bf16.msra.mxu0 %v540
    %559 = vmatprep.subr.bf16.mxu0 0
    %560 = vmatpush1.bf16.msra.mxu0 %v541
    %561 = vmatprep.subr.bf16.mxu0 0
    %562 = vmatpush1.bf16.msra.mxu0 %v542
    %563 = vmatprep.subr.bf16.mxu0 0
    %564 = vmatpush1.bf16.msra.mxu0 %v543
    %565 = vmatprep.subr.bf16.mxu0 0
    %566 = vmatpush1.bf16.msra.mxu0 %v544
    %567 = vmatprep.subr.bf16.mxu0 0
    %568 = vmatpush1.bf16.msra.mxu0 %v545
    %569 = vmatprep.subr.bf16.mxu0 0
    %570 = vmatpush1.bf16.msra.mxu0 %v546
    %571 = vmatprep.subr.bf16.mxu0 0
    %572 = vmatpush1.bf16.msra.mxu0 0
    %573 = vmatprep.subr.bf16.mxu0 0
    %574 = vmatpush1.bf16.msra.mxu0 0
    %575 = vmatprep.subr.bf16.mxu0 0
    %576 = vmatpush1.bf16.msra.mxu0 0
    %577 = vmatprep.subr.bf16.mxu0 0
    %578 = vmatpush1.bf16.msra.mxu0 0
    %579 = vmatprep.subr.bf16.mxu0 0
    %580 = vmatpush1.bf16.msra.mxu0 0
    %581 = vmatprep.subr.bf16.mxu0 0
    %582 = vmatpush1.bf16.msra.mxu0 0
    %583 = vmatprep.subr.bf16.mxu0 0
    %584 = vmatpush1.bf16.msra.mxu0 0
    %585 = vmatprep.subr.bf16.mxu0 0
    %586 = vmatpush1.bf16.msra.mxu0 0
    %587 = vmatprep.mubr.bf16.mxu0 0
    %588 = vmatmul.mubr.bf16.gmra.mrb[0].mxu0 %v500
    %v589 = vpop.f32.mrb[0].mxu0
    %v590 = vadd.f32 %v505, %v589
    %v591 = vpop.f32.mrb[0].mxu0
    %v592 = vpop.f32.mrb[0].mxu0
    %v593 = vpop.f32.mrb[0].mxu0
    %594 = vdwg.mxu0
    %v595 = vmax.f32 %v590, 0.0
    %v596 = vld [vmem:[#allocation11] sm:$0xf]
    %v597 = vld [vmem:[#allocation11 + $0x4] sm:$0xf]
    %v598 = vld [vmem:[#allocation11 + $0x8] sm:$0xf]
    %v599 = vld [vmem:[#allocation11 + $0xc] sm:$0xf]
    %v600 = vld [vmem:[#allocation11 + $0x10] sm:$0xf]
    %v601 = vld [vmem:[#allocation11 + $0x14] sm:$0xf]
    %v602 = vld [vmem:[#allocation11 + $0x18] sm:$0xf]
    %v603 = vld [vmem:[#allocation11 + $0x1c] sm:$0xf]
    %v604 = vld [vmem:[#allocation11 + $0x20] sm:$0xf]
    %v605 = vld [vmem:[#allocation11 + $0x24] sm:$0xf]
    %v606 = vld [vmem:[#allocation11 + $0x28] sm:$0xf]
    %v607 = vld [vmem:[#allocation11 + $0x2c] sm:$0xf]
    %v608 = vld [vmem:[#allocation11 + $0x30] sm:$0xf]
    %v609 = vld [vmem:[#allocation11 + $0x34] sm:$0xf]
    %v610 = vld [vmem:[#allocation11 + $0x38] sm:$0xf]
    %v611 = vld [vmem:[#allocation11 + $0x3c] sm:$0xf]
    %v612 = vld [vmem:[%s10] sm:$0x1]
    %v613 = vpack.c.bf16 %v595, %v595
    %v615 = vlaneseq
    %v616 = vshrl.u32 %v615, 7
    %v617 = vsub.s32 0, %v616
    %v618 = vrot.slane %v612, %v617
    %v636 = vunpack.c.l.b16 %v596
    %v637 = vunpack.c.l.b16 %v597
    %v638 = vunpack.c.l.b16 %v598
    %v639 = vunpack.c.l.b16 %v599
    %v640 = vunpack.c.l.b16 %v600
    %v641 = vunpack.c.l.b16 %v601
    %v642 = vunpack.c.l.b16 %v602
    %v643 = vunpack.c.l.b16 %v603
    %v644 = vunpack.c.l.b16 %v604
    %v645 = vunpack.c.l.b16 %v605
    %v646 = vunpack.c.l.b16 %v606
    %v647 = vunpack.c.l.b16 %v607
    %v648 = vunpack.c.l.b16 %v608
    %v649 = vunpack.c.l.b16 %v609
    %v650 = vunpack.c.l.b16 %v610
    %v651 = vunpack.c.l.b16 %v611
    %v652 = vpack.c.b16 %v637, %v636
    %v653 = vpack.c.b16 %v639, %v638
    %v654 = vpack.c.b16 %v641, %v640
    %v655 = vpack.c.b16 %v643, %v642
    %v656 = vpack.c.b16 %v645, %v644
    %v657 = vpack.c.b16 %v647, %v646
    %v658 = vpack.c.b16 %v649, %v648
    %v659 = vpack.c.b16 %v651, %v650
    %668 = vmatprep.subr.bf16.mxu0 0
    %669 = vmatpush1.bf16.msra.mxu0 %v652
    %670 = vmatprep.subr.bf16.mxu0 0
    %671 = vmatpush1.bf16.msra.mxu0 %v653
    %672 = vmatprep.subr.bf16.mxu0 0
    %673 = vmatpush1.bf16.msra.mxu0 %v654
    %674 = vmatprep.subr.bf16.mxu0 0
    %675 = vmatpush1.bf16.msra.mxu0 %v655
    %676 = vmatprep.subr.bf16.mxu0 0
    %677 = vmatpush1.bf16.msra.mxu0 %v656
    %678 = vmatprep.subr.bf16.mxu0 0
    %679 = vmatpush1.bf16.msra.mxu0 %v657
    %680 = vmatprep.subr.bf16.mxu0 0
    %681 = vmatpush1.bf16.msra.mxu0 %v658
    %682 = vmatprep.subr.bf16.mxu0 0
    %683 = vmatpush1.bf16.msra.mxu0 %v659
    %684 = vmatprep.subr.bf16.mxu0 0
    %685 = vmatpush1.bf16.msra.mxu0 0
    %686 = vmatprep.subr.bf16.mxu0 0
    %687 = vmatpush1.bf16.msra.mxu0 0
    %688 = vmatprep.subr.bf16.mxu0 0
    %689 = vmatpush1.bf16.msra.mxu0 0
    %690 = vmatprep.subr.bf16.mxu0 0
    %691 = vmatpush1.bf16.msra.mxu0 0
    %692 = vmatprep.subr.bf16.mxu0 0
    %693 = vmatpush1.bf16.msra.mxu0 0
    %694 = vmatprep.subr.bf16.mxu0 0
    %695 = vmatpush1.bf16.msra.mxu0 0
    %696 = vmatprep.subr.bf16.mxu0 0
    %697 = vmatpush1.bf16.msra.mxu0 0
    %698 = vmatprep.subr.bf16.mxu0 0
    %699 = vmatpush1.bf16.msra.mxu0 0
    %700 = vmatprep.mubr.bf16.mxu0 0
    %701 = vmatmul.mubr.bf16.gmra.mrb[0].mxu0 %v613
    %v702 = vpop.f32.mrb[0].mxu0
    %v703 = vadd.f32 %v618, %v702
    %v704 = vpop.f32.mrb[0].mxu0
    %v705 = vpop.f32.mrb[0].mxu0
    %v706 = vpop.f32.mrb[0].mxu0
    %707 = vdwg.mxu0
    %v708 = vmax.f32 %v703, 0.0
    %v709 = vld [vmem:[#allocation13] sm:$0xf]
    %v710 = vld [vmem:[#allocation13 + $0x4] sm:$0xf]
    %v711 = vld [vmem:[#allocation13 + $0x8] sm:$0xf]
    %v712 = vld [vmem:[#allocation13 + $0xc] sm:$0xf]
    %v713 = vld [vmem:[#allocation13 + $0x10] sm:$0xf]
    %v714 = vld [vmem:[#allocation13 + $0x14] sm:$0xf]
    %v715 = vld [vmem:[#allocation13 + $0x18] sm:$0xf]
    %v716 = vld [vmem:[#allocation13 + $0x1c] sm:$0xf]
    %v717 = vld [vmem:[#allocation13 + $0x20] sm:$0xf]
    %v718 = vld [vmem:[#allocation13 + $0x24] sm:$0xf]
    %v719 = vld [vmem:[#allocation13 + $0x28] sm:$0xf]
    %v720 = vld [vmem:[#allocation13 + $0x2c] sm:$0xf]
    %v721 = vld [vmem:[#allocation13 + $0x30] sm:$0xf]
    %v722 = vld [vmem:[#allocation13 + $0x34] sm:$0xf]
    %v723 = vld [vmem:[#allocation13 + $0x38] sm:$0xf]
    %v724 = vld [vmem:[#allocation13 + $0x3c] sm:$0xf]
    %v725 = vld [vmem:[%s12] sm:$0x1]
    %v726 = vpack.c.bf16 %v708, %v708
    %v728 = vlaneseq
    %v729 = vshrl.u32 %v728, 7
    %v730 = vsub.s32 0, %v729
    %v731 = vrot.slane %v725, %v730
    %v749 = vunpack.c.l.b16 %v709
    %v750 = vunpack.c.l.b16 %v710
    %v751 = vunpack.c.l.b16 %v711
    %v752 = vunpack.c.l.b16 %v712
    %v753 = vunpack.c.l.b16 %v713
    %v754 = vunpack.c.l.b16 %v714
    %v755 = vunpack.c.l.b16 %v715
    %v756 = vunpack.c.l.b16 %v716
    %v757 = vunpack.c.l.b16 %v717
    %v758 = vunpack.c.l.b16 %v718
    %v759 = vunpack.c.l.b16 %v719
    %v760 = vunpack.c.l.b16 %v720
    %v761 = vunpack.c.l.b16 %v721
    %v762 = vunpack.c.l.b16 %v722
    %v763 = vunpack.c.l.b16 %v723
    %v764 = vunpack.c.l.b16 %v724
    %v765 = vpack.c.b16 %v750, %v749
    %v766 = vpack.c.b16 %v752, %v751
    %v767 = vpack.c.b16 %v754, %v753
    %v768 = vpack.c.b16 %v756, %v755
    %v769 = vpack.c.b16 %v758, %v757
    %v770 = vpack.c.b16 %v760, %v759
    %v771 = vpack.c.b16 %v762, %v761
    %v772 = vpack.c.b16 %v764, %v763
    %781 = vmatprep.subr.bf16.mxu0 0
    %782 = vmatpush1.bf16.msra.mxu0 %v765
    %783 = vmatprep.subr.bf16.mxu0 0
    %784 = vmatpush1.bf16.msra.mxu0 %v766
    %785 = vmatprep.subr.bf16.mxu0 0
    %786 = vmatpush1.bf16.msra.mxu0 %v767
    %787 = vmatprep.subr.bf16.mxu0 0
    %788 = vmatpush1.bf16.msra.mxu0 %v768
    %789 = vmatprep.subr.bf16.mxu0 0
    %790 = vmatpush1.bf16.msra.mxu0 %v769
    %791 = vmatprep.subr.bf16.mxu0 0
    %792 = vmatpush1.bf16.msra.mxu0 %v770
    %793 = vmatprep.subr.bf16.mxu0 0
    %794 = vmatpush1.bf16.msra.mxu0 %v771
    %795 = vmatprep.subr.bf16.mxu0 0
    %796 = vmatpush1.bf16.msra.mxu0 %v772
    %797 = vmatprep.subr.bf16.mxu0 0
    %798 = vmatpush1.bf16.msra.mxu0 0
    %799 = vmatprep.subr.bf16.mxu0 0
    %800 = vmatpush1.bf16.msra.mxu0 0
    %801 = vmatprep.subr.bf16.mxu0 0
    %802 = vmatpush1.bf16.msra.mxu0 0
    %803 = vmatprep.subr.bf16.mxu0 0
    %804 = vmatpush1.bf16.msra.mxu0 0
    %805 = vmatprep.subr.bf16.mxu0 0
    %806 = vmatpush1.bf16.msra.mxu0 0
    %807 = vmatprep.subr.bf16.mxu0 0
    %808 = vmatpush1.bf16.msra.mxu0 0
    %809 = vmatprep.subr.bf16.mxu0 0
    %810 = vmatpush1.bf16.msra.mxu0 0
    %811 = vmatprep.subr.bf16.mxu0 0
    %812 = vmatpush1.bf16.msra.mxu0 0
    %813 = vmatprep.mubr.bf16.mxu0 0
    %814 = vmatmul.mubr.bf16.gmra.mrb[0].mxu0 %v726
    %v815 = vpop.f32.mrb[0].mxu0
    %v816 = vadd.f32 %v731, %v815
    %v817 = vpop.f32.mrb[0].mxu0
    %v818 = vpop.f32.mrb[0].mxu0
    %v819 = vpop.f32.mrb[0].mxu0
    %820 = vdwg.mxu0
    %v821 = vand.u32 2147483647, %v816
    %v822 = vsub.f32 0.0, %v821
    %v823 = vmul.f32 %v822, 1.442695
    %v824 = vpow.pop %v823
    %v825 = vadd.f32 %v824, 1.0
    %v826 = vrcp.pop %v825
    %vm827 = vcmp.ge.f32.partialorder %v816, 0.0
    %v828 = vmul.f32 %v824, %v826
    %v829 = vsel %vm827, %v826, %v828
    %830 = vst [vmem:[#allocation14] sm:$0xff] %v829
    // Predicated region
    $region82: #{tpu_custom_call.1} parent=1 // pred_check
      _
    $region83: #{tpu_custom_call.1} parent=1 // pred_check_branch
      %832 = sbr.rel (0) target = $region85
    $region84: #{tpu_custom_call.1} parent=1 // pred_region
      %s834 = ssub.s32 128, 128
      %835 = vsyncadd [#allocation4], %s834
      %s837 = sshll.u32 [#allocation14], 4
      %s838 = int_to_ptr.vmem [resolvable:$true] %s837
      %840 = dma.vmem_to_hbm [thread:$0]  %s838, 128, %s13, [#allocation4]
    $region85: #{tpu_custom_call.1} parent=1 // pred_fallthru
      _
    // Predicated region
    $region86: #{tpu_custom_call.1} parent=1 // pred_check
      _
    $region87: #{tpu_custom_call.1} parent=1 // pred_check_branch
      %842 = sbr.rel (0) target = $region89
    $region88: #{tpu_custom_call.1} parent=1 // pred_region
      %s844 = ssub.s32 128, 128
      %845 = vsyncadd [#allocation16], %s844
      %s847 = sshll.u32 [#allocation15], 4
      %s848 = int_to_ptr.vmem [resolvable:$true] %s847
      %850 = dma.vmem_to_hbm [thread:$0]  %s848, 128, %s14, [#allocation16]
    $region89: #{tpu_custom_call.1} parent=1 // pred_fallthru
      _
    // Predicated region
    $region90: #{tpu_custom_call.1} parent=1 // pred_check
      _
    $region91: #{tpu_custom_call.1} parent=1 // pred_check_branch
      %852 = sbr.rel (0) target = $region93
    $region92: #{tpu_custom_call.1} parent=1 // pred_region
      %853 = dma.done [#allocation4], 128
    $region93: #{tpu_custom_call.1} parent=1 // pred_fallthru
      _
    // Predicated region
    $region94: #{tpu_custom_call.1} parent=1 // pred_check
      _
    $region95: #{tpu_custom_call.1} parent=1 // pred_check_branch
      %855 = sbr.rel (0) target = $region97
    $region96: #{tpu_custom_call.1} parent=1 // pred_region
      %856 = dma.done [#allocation16], 128
    $region97: #{tpu_custom_call.1} parent=1 // pred_fallthru
      _
    %857 = vsyncpa [#allocation3], 1
    %858 = vsyncpa [#allocation6], 1
    %859 = vsyncpa [#allocation9], 1
    %860 = vsyncpa [#allocation12], 1
    %861 = vsyncpa [#allocation4], 1
    %862 = vsyncpa [#allocation16], 1

</llo_original>
